<compile_context>
chip_gen: v5e
topology: v5e:2x2
jax: 0.10.0
libtpu: 0.0.40
codegen_flags: <defaults>
</compile_context>

<pallas_src>
import jax
import jax.numpy as jnp
import numpy as np
from jax.experimental import pallas as pl
from jax.experimental.pallas import tpu as pltpu


# ------------------------------- Pallas kernel --------------------------------------
def ngcf_kernel(blk_start_ref, num_blk_ref,            # scalar prefetch (SMEM)
                x_self_ref, xs_cat_ref, dst_ref, norm_ref, w_cat_ref,
                b_self_ref, b_edge_ref,                # VMEM input blocks
                out_ref,                               # output block
                acc_ref):                              # f32 VMEM accumulator scratch
    i = pl.program_id(0)                               # dst row tile
    j = pl.program_id(1)                               # edge block within this tile
    tm, f_in = x_self_ref.shape
    te = xs_cat_ref.shape[0]

    # ---- init: self-loop message  W1(x_dst) + b1 -----------------------------------
    @pl.when(j == 0)
    def _init():
        w1 = w_cat_ref[0:f_in, :]                      # top half of stacked [W1; W2]
        acc_ref[...] = (
            jnp.dot(x_self_ref[...], w1, preferred_element_type=jnp.float32)
            + b_self_ref[...]
        )

    # ---- accumulate this tile's edge blocks (edges sorted by dst) ------------------
    @pl.when(j < num_blk_ref[i])
    def _edges():
        # fused W1/W2: [x_src | x_src*x_dst] @ [W1; W2] + (b1 + b2), then norm in f32
        msg = (jnp.dot(xs_cat_ref[...], w_cat_ref[...],
                       preferred_element_type=jnp.float32)
               + b_edge_ref[...])                                    # (te, f_out_pad) f32
        msg = msg * norm_ref[...]                                    # per-edge norm, f32
        # local EXACT 0/1 one-hot scatter (scatter @ msg == sum over edges into each row)
        rows = i * tm + jax.lax.broadcasted_iota(jnp.int32, (tm, te), 0)
        scat = (rows == dst_ref[...]).astype(jnp.bfloat16)           # (tm, te) 0/1
        acc_ref[...] += jnp.dot(scat, msg.astype(jnp.bfloat16),
                                preferred_element_type=jnp.float32)

    # ---- finalize: LeakyReLU(0.2) -> Dropout (eval = id) -> L2 normalize -----------
    @pl.when(j == pl.num_programs(1) - 1)
    def _final():
        h = acc_ref[...]
        h = jnp.where(h > 0, h, 0.2 * h)
        # TODO(synk): training-mode dropout would use pltpu.prng_seed + stateful_bernoulli
        ssq = jnp.sum(h * h, axis=1, keepdims=True)
        # F.normalize: h / max(||h||, 1e-12)  ==  h * rsqrt(max(||h||^2, 1e-24))
        out_ref[...] = h * jax.lax.rsqrt(jnp.maximum(ssq, 1e-24))


# ---------------------------------- wrapper ------------------------------------------
def ngcf_layer_forward(feat_user, feat_item, e_user, e_item, norm_e,
                       W1, b1, W2, b2, *, tile_m=128, tile_e=512):
    """NGCFLayer forward on a bipartite user/item interaction graph.

    e_user[k], e_item[k] : endpoints of interaction k (messages flow both directions)
    norm_e[k]            : symmetric per-edge norm (same for both directions)
    W1, W2               : (in_size, out_size)  (PyTorch Linear weight, transposed)
    b1, b2               : (out_size,)
    """
    assert tile_m % 8 == 0 and tile_e % 128 == 0
    n_user, f_in = feat_user.shape
    n_item = feat_item.shape[0]
    f_out = W1.shape[1]
    n_total = n_user + n_item

    # ------------- host-side graph bookkeeping (numpy glue) -------------------------
    eu = np.asarray(e_user).astype(np.int32)
    ei = np.asarray(e_item).astype(np.int32)
    # global node ids: users [0, n_user), items [n_user, n_user+n_item)
    dst_glob = np.concatenate([n_user + ei,      # (user,'ui',item): dst = item
                               eu])              # (item,'iu',user): dst = user
    order = np.argsort(dst_glob, kind="stable").astype(np.int32)
    dst_sorted = dst_glob[order].astype(np.int32)
    e_tot = int(dst_sorted.shape[0])

    # ------------- per-edge gathered features (plain-JAX glue, like DGL's gather) ---
    # TODO(synk): for very large E, move this gather + xs*xd product into the kernel
    #             via scalar-prefetched src ids / manual DMA gather.
    xs = jnp.concatenate([feat_user[e_user], feat_item[e_item]], axis=0)  # src feats
    xd = jnp.concatenate([feat_item[e_item], feat_user[e_user]], axis=0)  # dst feats
    nrm = jnp.concatenate([norm_e, norm_e], axis=0)
    perm = jnp.asarray(order)
    xs, xd, nrm = xs[perm], xd[perm], nrm[perm]
    xs_cat = jnp.concatenate([xs, xs * xd], axis=1)                       # (2E, 2*f_in)

    # ------------- padding (tile-aligned rows/edges, lane-dense output) -------------
    n_pad = ((n_total + tile_m - 1) // tile_m) * tile_m
    e_pad = max(tile_e, ((e_tot + tile_e - 1) // tile_e) * tile_e)
    f_out_pad = ((f_out + 127) // 128) * 128

    x_all = jnp.concatenate([feat_user, feat_item], axis=0)
    x_all = jnp.pad(x_all, ((0, n_pad - n_total), (0, 0))).astype(jnp.bfloat16)
    xs_cat = jnp.pad(xs_cat, ((0, e_pad - e_tot), (0, 0))).astype(jnp.bfloat16)
    # per-edge norm stays f32 and is applied to msg rows inside the kernel
    norm_col = jnp.pad(nrm, (0, e_pad - e_tot)).reshape(e_pad, 1).astype(jnp.float32)
    dst_np = np.full((e_pad,), -1, np.int32)      # pad edges never match any dst row
    dst_np[:e_tot] = dst_sorted
    dst_row = jnp.asarray(dst_np).reshape(1, e_pad)

    w_cat = jnp.concatenate([W1, W2], axis=0)                             # (2*f_in, f_out)
    w_cat = jnp.pad(w_cat, ((0, 0), (0, f_out_pad - f_out))).astype(jnp.bfloat16)
    b_self = jnp.pad(b1.reshape(1, -1), ((0, 0), (0, f_out_pad - f_out))).astype(jnp.float32)
    b_edge = jnp.pad((b1 + b2).reshape(1, -1),
                     ((0, 0), (0, f_out_pad - f_out))).astype(jnp.float32)

    # ------------- per dst-tile edge-block ranges (scalar prefetch metadata) --------
    n_tiles = n_pad // tile_m
    n_eblk = e_pad // tile_e
    blk_start = np.zeros((n_tiles,), np.int32)
    num_blk = np.zeros((n_tiles,), np.int32)
    for t in range(n_tiles):
        lo = int(np.searchsorted(dst_sorted, t * tile_m, side="left"))
        hi = int(np.searchsorted(dst_sorted, (t + 1) * tile_m, side="left"))
        if hi > lo:
            blk_start[t] = lo // tile_e
            num_blk[t] = (hi - 1) // tile_e - lo // tile_e + 1
    max_blk = int(max(1, int(num_blk.max())))
    del n_eblk  # index maps clamp to each tile's own range, never the global last block

    # ------------- pallas_call -------------------------------------------------------
    def dst_map(i, j, bs, nb):
        return (i, 0)

    def _clamped_blk(i, j, bs, nb):
        # clamp to THIS tile's last valid block: dead iterations re-use the previous
        # block index, so Pallas skips the redundant DMA entirely.
        return bs[i] + jnp.minimum(j, jnp.maximum(nb[i] - 1, 0))

    def eblk_map(i, j, bs, nb):                    # edge-feature blocks (rows = edges)
        return (_clamped_blk(i, j, bs, nb), 0)

    def erow_map(i, j, bs, nb):                    # per-edge dst ids laid out (1, E)
        return (0, _clamped_blk(i, j, bs, nb))

    def ecol_map(i, j, bs, nb):                    # per-edge norms laid out (E, 1)
        return (_clamped_blk(i, j, bs, nb), 0)

    def const_map(i, j, bs, nb):
        return (0, 0)

    grid_spec = pltpu.PrefetchScalarGridSpec(
        num_scalar_prefetch=2,
        grid=(n_tiles, max_blk),
        in_specs=[
            pl.BlockSpec((tile_m, f_in), dst_map),            # dst-node features
            pl.BlockSpec((tile_e, 2 * f_in), eblk_map),       # [x_src | x_src*x_dst]
            pl.BlockSpec((1, tile_e), erow_map),              # edge dst ids (int32)
            pl.BlockSpec((tile_e, 1), ecol_map),              # edge norms (f32 column)
            pl.BlockSpec((2 * f_in, f_out_pad), const_map),   # stacked [W1; W2]
            pl.BlockSpec((1, f_out_pad), const_map),          # b1
            pl.BlockSpec((1, f_out_pad), const_map),          # b1 + b2
        ],
        out_specs=pl.BlockSpec((tile_m, f_out_pad), dst_map),
        scratch_shapes=[pltpu.VMEM((tile_m, f_out_pad), jnp.float32)],
    )

    # per-step VMEM footprint at defaults (tm=128, te=512, f_in=32, f_out_pad=128):
    #   xs_cat 64 KiB + x_self 8 KiB + out 64 KiB + acc 64 KiB + weights/bias ~20 KiB,
    #   double-buffered -> well under 1 MiB; 48 MiB limit leaves headroom even on v7x.
    out = pl.pallas_call(
        ngcf_kernel,
        out_shape=jax.ShapeDtypeStruct((n_pad, f_out_pad), jnp.float32),
        grid_spec=grid_spec,
        compiler_params=pltpu.CompilerParams(
            dimension_semantics=("parallel", "arbitrary"),
            vmem_limit_bytes=48 * 1024 * 1024,
        ),
    )(jnp.asarray(blk_start), jnp.asarray(num_blk),
      x_all, xs_cat, dst_row, norm_col, w_cat, b_self, b_edge)

    h_all = out[:n_total, :f_out]
    return h_all[:n_user], h_all[n_user:]


# ---------------------------- plain-JAX f32 reference --------------------------------
def ngcf_reference(feat_user, feat_item, e_user, e_item, norm_e, W1, b1, W2, b2):
    def edge_msgs(xs, xd):
        return norm_e[:, None] * ((xs @ W1 + b1) + ((xs * xd) @ W2 + b2))

    msg_item = edge_msgs(feat_user[e_user], feat_item[e_item])   # dst = item
    msg_user = edge_msgs(feat_item[e_item], feat_user[e_user])   # dst = user
    agg_item = jnp.zeros((feat_item.shape[0], W1.shape[1]), jnp.float32).at[e_item].add(msg_item)
    agg_user = jnp.zeros((feat_user.shape[0], W1.shape[1]), jnp.float32).at[e_user].add(msg_user)

    def finish(x_self, agg):
        h = (x_self @ W1 + b1) + agg
        h = jnp.where(h > 0, h, 0.2 * h)
        n = jnp.sqrt(jnp.sum(h * h, axis=1, keepdims=True))
        return h / jnp.maximum(n, 1e-12)

    return finish(feat_user, agg_user), finish(feat_item, agg_item)


# ------------------------------------- driver ----------------------------------------
if __name__ == "__main__":
    key = jax.random.PRNGKey(0)
    k_xu, k_xi, k_w1, k_w2, k_src, k_dst = jax.random.split(key, 6)

    # synthetic bipartite user/item graph (small, but spans 2 dst tiles and multiple
    # edge blocks at the recommended tile_m=128 / tile_e=512, exercising the clamped
    # ragged edge-block schedule and both TensorCores on the "parallel" axis)
    N_USER, N_ITEM = 96, 160
    IN_SIZE, OUT_SIZE = 32, 32
    E = 640

    feat_user = jax.random.normal(k_xu, (N_USER, IN_SIZE), jnp.float32)
    feat_item = jax.random.normal(k_xi, (N_ITEM, IN_SIZE), jnp.float32)

    def xavier_uniform(k, fan_in, fan_out):
        a = float(np.sqrt(6.0 / (fan_in + fan_out)))
        return jax.random.uniform(k, (fan_in, fan_out), jnp.float32, -a, a)

    # parameters (xavier weights, zero biases); stored (in, out) = PyTorch weight.T
    W1 = xavier_uniform(k_w1, IN_SIZE, OUT_SIZE)
    W2 = xavier_uniform(k_w2, IN_SIZE, OUT_SIZE)
    b1 = jnp.zeros((OUT_SIZE,), jnp.float32)
    b2 = jnp.zeros((OUT_SIZE,), jnp.float32)

    # random user-item interactions; messages flow user->item and item->user
    e_user = jax.random.randint(k_src, (E,), 0, N_USER)
    e_item = jax.random.randint(k_dst, (E,), 0, N_ITEM)

    # symmetric NGCF norm 1/sqrt(deg_u * deg_i) per interaction
    deg_u = jnp.zeros((N_USER,), jnp.float32).at[e_user].add(1.0)
    deg_i = jnp.zeros((N_ITEM,), jnp.float32).at[e_item].add(1.0)
    norm_e = 1.0 / jnp.sqrt(deg_u[e_user] * deg_i[e_item])        # (E,)

    h_user, h_item = ngcf_layer_forward(feat_user, feat_item, e_user, e_item,
                                        norm_e, W1, b1, W2, b2,
                                        tile_m=128, tile_e=512)
    jax.block_until_ready((h_user, h_item))

    # correctness check vs pure-JAX f32 reference
    ref_user, ref_item = ngcf_reference(feat_user, feat_item, e_user, e_item,
                                        norm_e, W1, b1, W2, b2)
    # bf16 MXU operands (features / messages) with f32 accumulation and f32 norm/bias
    np.testing.assert_allclose(np.asarray(h_user), np.asarray(ref_user), rtol=2e-2, atol=2e-2)
    np.testing.assert_allclose(np.asarray(h_item), np.asarray(ref_item), rtol=2e-2, atol=2e-2)

    print("KERNEL_OK")
</pallas_src>

<mosaic_0001>
module attributes {stable_mosaic.version = 11 : i64} {
  func.func @ngcf_kernel(%arg0: i32, %arg1: i32, %arg2: memref<2xi32, #tpu.memory_space<smem>>, %arg3: memref<2xi32, #tpu.memory_space<smem>>, %arg4: memref<128x32xbf16, #tpu.memory_space<vmem>>, %arg5: memref<512x64xbf16, #tpu.memory_space<vmem>>, %arg6: memref<1x512xi32, #tpu.memory_space<vmem>>, %arg7: memref<512x1xf32, #tpu.memory_space<vmem>>, %arg8: memref<64x128xbf16, #tpu.memory_space<vmem>>, %arg9: memref<1x128xf32, #tpu.memory_space<vmem>>, %arg10: memref<1x128xf32, #tpu.memory_space<vmem>>, %arg11: memref<128x128xf32, #tpu.memory_space<vmem>>, %arg12: memref<128x128xf32, #tpu.memory_space<vmem>>) attributes {dimension_semantics = [#tpu.dimension_semantics<parallel>, #tpu.dimension_semantics<arbitrary>], iteration_bounds = array<i64: 2, 2>, scalar_prefetch = 2 : i64, scratch_operands = 1 : i64, tpu.core_type = #tpu.core_type<tc>, window_params = [{transform_indices = @transform_0, window_bounds = array<i64: 128, 32>}, {transform_indices = @transform_1, window_bounds = array<i64: 512, 64>}, {transform_indices = @transform_2, window_bounds = array<i64: 1, 512>}, {transform_indices = @transform_3, window_bounds = array<i64: 512, 1>}, {pipeline_mode = #tpu.pipeline_mode<synchronous>, transform_indices = @transform_4, window_bounds = array<i64: 64, 128>}, {pipeline_mode = #tpu.pipeline_mode<synchronous>, transform_indices = @transform_5, window_bounds = array<i64: 1, 128>}, {pipeline_mode = #tpu.pipeline_mode<synchronous>, transform_indices = @transform_6, window_bounds = array<i64: 1, 128>}, {transform_indices = @transform_7, window_bounds = array<i64: 128, 128>}]} {
    %c0_i32 = arith.constant 0 : i32
    %0 = arith.cmpi eq, %arg1, %c0_i32 : i32
    %1 = arith.extui %0 : i1 to i32
    %c0_i32_0 = arith.constant 0 : i32
    %2 = arith.cmpi ne, %1, %c0_i32_0 : i32
    scf.if %2 {
      %c0 = arith.constant 0 : index
      %c0_3 = arith.constant 0 : index
      %11 = vector.load %arg8[%c0, %c0_3] : memref<64x128xbf16, #tpu.memory_space<vmem>>, vector<32x128xbf16>
      %c0_4 = arith.constant 0 : index
      %c0_5 = arith.constant 0 : index
      %12 = vector.load %arg4[%c0_4, %c0_5] : memref<128x32xbf16, #tpu.memory_space<vmem>>, vector<128x32xbf16>
      %cst = arith.constant dense<0.000000e+00> : vector<128x128xf32>
      %13 = tpu.matmul %12, %11, %cst {dimension_numbers = #tpu.dot_dimension_numbers<[1], [0], [0], [1], [0, 0, 1, 1], [], []>} : vector<128x32xbf16>, vector<32x128xbf16>, vector<128x128xf32> -> vector<128x128xf32>
      %c0_6 = arith.constant 0 : index
      %c0_7 = arith.constant 0 : index
      %14 = vector.load %arg9[%c0_6, %c0_7] : memref<1x128xf32, #tpu.memory_space<vmem>>, vector<1x128xf32>
      %15 = vector.broadcast %14 : vector<1x128xf32> to vector<128x128xf32>
      %16 = arith.addf %13, %15 : vector<128x128xf32>
      %c0_8 = arith.constant 0 : index
      %c0_9 = arith.constant 0 : index
      %17 = vector.load %arg12[%c0_8, %c0_9] : memref<128x128xf32, #tpu.memory_space<vmem>>, vector<128x128xf32>
      tpu.vector_store %arg12[%c0_8, %c0_9], %16 {strides = array<i32>} : memref<128x128xf32, #tpu.memory_space<vmem>>, vector<128x128xf32>,
    } else {
    }
    %3 = arith.index_cast %arg0 : i32 to index
    %4 = memref.load %arg3[%3] : memref<2xi32, #tpu.memory_space<smem>>
    %5 = arith.cmpi slt, %arg1, %4 : i32
    %6 = arith.extui %5 : i1 to i32
    %c0_i32_1 = arith.constant 0 : i32
    %7 = arith.cmpi ne, %6, %c0_i32_1 : i32
    scf.if %7 {
      %c0 = arith.constant 0 : index
      %c0_3 = arith.constant 0 : index
      %11 = vector.load %arg5[%c0, %c0_3] : memref<512x64xbf16, #tpu.memory_space<vmem>>, vector<512x64xbf16>
      %c0_4 = arith.constant 0 : index
      %c0_5 = arith.constant 0 : index
      %12 = vector.load %arg8[%c0_4, %c0_5] : memref<64x128xbf16, #tpu.memory_space<vmem>>, vector<64x128xbf16>
      %cst = arith.constant dense<0.000000e+00> : vector<512x128xf32>
      %13 = tpu.matmul %11, %12, %cst {dimension_numbers = #tpu.dot_dimension_numbers<[1], [0], [0], [1], [0, 0, 1, 1], [], []>} : vector<512x64xbf16>, vector<64x128xbf16>, vector<512x128xf32> -> vector<512x128xf32>
      %c0_6 = arith.constant 0 : index
      %c0_7 = arith.constant 0 : index
      %14 = vector.load %arg10[%c0_6, %c0_7] : memref<1x128xf32, #tpu.memory_space<vmem>>, vector<1x128xf32>
      %15 = vector.broadcast %14 : vector<1x128xf32> to vector<512x128xf32>
      %16 = arith.addf %13, %15 : vector<512x128xf32>
      %c0_8 = arith.constant 0 : index
      %c0_9 = arith.constant 0 : index
      %17 = vector.load %arg7[%c0_8, %c0_9] : memref<512x1xf32, #tpu.memory_space<vmem>>, vector<512x1xf32>
      %18 = vector.broadcast %17 : vector<512x1xf32> to vector<512x128xf32>
      %19 = arith.mulf %16, %18 : vector<512x128xf32>
      %c128_i32 = arith.constant 128 : i32
      %20 = arith.muli %arg0, %c128_i32 : i32
      %21 = tpu.iota {dimensions = array<i32: 0>} : vector<128x512xi32>
      %22 = vector.broadcast %20 : i32 to vector<128x512xi32>
      %23 = arith.addi %22, %21 : vector<128x512xi32>
      %c0_10 = arith.constant 0 : index
      %c0_11 = arith.constant 0 : index
      %24 = vector.load %arg6[%c0_10, %c0_11] : memref<1x512xi32, #tpu.memory_space<vmem>>, vector<1x512xi32>
      %25 = vector.broadcast %24 : vector<1x512xi32> to vector<128x512xi32>
      %26 = arith.cmpi eq, %23, %25 : vector<128x512xi32>
      %27 = arith.extui %26 : vector<128x512xi1> to vector<128x512xi32>
      %28 = arith.sitofp %27 : vector<128x512xi32> to vector<128x512xf32>
      %29 = arith.truncf %28 : vector<128x512xf32> to vector<128x512xbf16>
      %c0_12 = arith.constant 0 : index
      %c0_13 = arith.constant 0 : index
      %30 = vector.load %arg12[%c0_12, %c0_13] : memref<128x128xf32, #tpu.memory_space<vmem>>, vector<128x128xf32>
      %31 = arith.truncf %19 : vector<512x128xf32> to vector<512x128xbf16>
      %cst_14 = arith.constant dense<0.000000e+00> : vector<128x128xf32>
      %32 = tpu.matmul %29, %31, %cst_14 {dimension_numbers = #tpu.dot_dimension_numbers<[1], [0], [0], [1], [0, 0, 1, 1], [], []>} : vector<128x512xbf16>, vector<512x128xbf16>, vector<128x128xf32> -> vector<128x128xf32>
      %33 = arith.addf %30, %32 : vector<128x128xf32>
      %c0_15 = arith.constant 0 : index
      %c0_16 = arith.constant 0 : index
      %34 = vector.load %arg12[%c0_15, %c0_16] : memref<128x128xf32, #tpu.memory_space<vmem>>, vector<128x128xf32>
      tpu.vector_store %arg12[%c0_15, %c0_16], %33 {strides = array<i32>} : memref<128x128xf32, #tpu.memory_space<vmem>>, vector<128x128xf32>,
    } else {
    }
    %c1_i32 = arith.constant 1 : i32
    %8 = arith.cmpi eq, %arg1, %c1_i32 : i32
    %9 = arith.extui %8 : i1 to i32
    %c0_i32_2 = arith.constant 0 : i32
    %10 = arith.cmpi ne, %9, %c0_i32_2 : i32
    scf.if %10 {
      %c0 = arith.constant 0 : index
      %c0_3 = arith.constant 0 : index
      %11 = vector.load %arg12[%c0, %c0_3] : memref<128x128xf32, #tpu.memory_space<vmem>>, vector<128x128xf32>
      %cst = arith.constant 0.000000e+00 : f32
      %12 = vector.broadcast %cst : f32 to vector<128x128xf32>
      %13 = arith.cmpf ogt, %11, %12 : vector<128x128xf32>
      %cst_4 = arith.constant 2.000000e-01 : f32
      %14 = vector.broadcast %cst_4 : f32 to vector<128x128xf32>
      %15 = arith.mulf %14, %11 : vector<128x128xf32>
      %16 = arith.select %13, %11, %15 : vector<128x128xi1>, vector<128x128xf32>
      %17 = arith.mulf %16, %16 : vector<128x128xf32>
      %cst_5 = arith.constant dense<0.000000e+00> : vector<128xf32>
      %18 = vector.multi_reduction <add>, %17, %cst_5 [1] : vector<128x128xf32> to vector<128xf32>
      %19 = vector.shape_cast %18 : vector<128xf32> to vector<128x1xf32>
      %cst_6 = arith.constant 1.000000e-24 : f32
      %20 = vector.broadcast %cst_6 : f32 to vector<128x1xf32>
      %21 = arith.maximumf %19, %20 : vector<128x1xf32>
      %22 = math.rsqrt %21 : vector<128x1xf32>
      %23 = vector.broadcast %22 : vector<128x1xf32> to vector<128x128xf32>
      %24 = arith.mulf %16, %23 : vector<128x128xf32>
      %c0_7 = arith.constant 0 : index
      %c0_8 = arith.constant 0 : index
      %25 = vector.load %arg11[%c0_7, %c0_8] : memref<128x128xf32, #tpu.memory_space<vmem>>, vector<128x128xf32>
      tpu.vector_store %arg11[%c0_7, %c0_8], %24 {strides = array<i32>} : memref<128x128xf32, #tpu.memory_space<vmem>>, vector<128x128xf32>,
    } else {
    }
    return
  }
  func.func @transform_0(%arg0: i32, %arg1: i32, %arg2: memref<2xi32, #tpu.memory_space<smem>>, %arg3: memref<2xi32, #tpu.memory_space<smem>>) -> (i32, i32) {
    %c0_i32 = arith.constant 0 : i32
    %c0_i32_0 = arith.constant 0 : i32
    return %arg0, %c0_i32 : i32, i32
  }
  func.func @transform_1(%arg0: i32, %arg1: i32, %arg2: memref<2xi32, #tpu.memory_space<smem>>, %arg3: memref<2xi32, #tpu.memory_space<smem>>) -> (i32, i32) {
    %0 = arith.index_cast %arg0 : i32 to index
    %1 = memref.load %arg2[%0] : memref<2xi32, #tpu.memory_space<smem>>
    %2 = arith.index_cast %arg0 : i32 to index
    %3 = memref.load %arg3[%2] : memref<2xi32, #tpu.memory_space<smem>>
    %c1_i32 = arith.constant 1 : i32
    %4 = arith.subi %3, %c1_i32 : i32
    %c0_i32 = arith.constant 0 : i32
    %5 = arith.maxsi %4, %c0_i32 : i32
    %6 = arith.minsi %arg1, %5 : i32
    %7 = arith.addi %1, %6 : i32
    %c0_i32_0 = arith.constant 0 : i32
    %c0_i32_1 = arith.constant 0 : i32
    return %7, %c0_i32_0 : i32, i32
  }
  func.func @transform_2(%arg0: i32, %arg1: i32, %arg2: memref<2xi32, #tpu.memory_space<smem>>, %arg3: memref<2xi32, #tpu.memory_space<smem>>) -> (i32, i32) {
    %0 = arith.index_cast %arg0 : i32 to index
    %1 = memref.load %arg2[%0] : memref<2xi32, #tpu.memory_space<smem>>
    %2 = arith.index_cast %arg0 : i32 to index
    %3 = memref.load %arg3[%2] : memref<2xi32, #tpu.memory_space<smem>>
    %c1_i32 = arith.constant 1 : i32
    %4 = arith.subi %3, %c1_i32 : i32
    %c0_i32 = arith.constant 0 : i32
    %5 = arith.maxsi %4, %c0_i32 : i32
    %6 = arith.minsi %arg1, %5 : i32
    %7 = arith.addi %1, %6 : i32
    %c0_i32_0 = arith.constant 0 : i32
    %c0_i32_1 = arith.constant 0 : i32
    return %c0_i32_0, %7 : i32, i32
  }
  func.func @transform_3(%arg0: i32, %arg1: i32, %arg2: memref<2xi32, #tpu.memory_space<smem>>, %arg3: memref<2xi32, #tpu.memory_space<smem>>) -> (i32, i32) {
    %0 = arith.index_cast %arg0 : i32 to index
    %1 = memref.load %arg2[%0] : memref<2xi32, #tpu.memory_space<smem>>
    %2 = arith.index_cast %arg0 : i32 to index
    %3 = memref.load %arg3[%2] : memref<2xi32, #tpu.memory_space<smem>>
    %c1_i32 = arith.constant 1 : i32
    %4 = arith.subi %3, %c1_i32 : i32
    %c0_i32 = arith.constant 0 : i32
    %5 = arith.maxsi %4, %c0_i32 : i32
    %6 = arith.minsi %arg1, %5 : i32
    %7 = arith.addi %1, %6 : i32
    %c0_i32_0 = arith.constant 0 : i32
    %c0_i32_1 = arith.constant 0 : i32
    return %7, %c0_i32_0 : i32, i32
  }
  func.func @transform_4(%arg0: i32, %arg1: i32, %arg2: memref<2xi32, #tpu.memory_space<smem>>, %arg3: memref<2xi32, #tpu.memory_space<smem>>) -> (i32, i32) {
    %c0_i32 = arith.constant 0 : i32
    %c0_i32_0 = arith.constant 0 : i32
    %c0_i32_1 = arith.constant 0 : i32
    return %c0_i32, %c0_i32_0 : i32, i32
  }
  func.func @transform_5(%arg0: i32, %arg1: i32, %arg2: memref<2xi32, #tpu.memory_space<smem>>, %arg3: memref<2xi32, #tpu.memory_space<smem>>) -> (i32, i32) {
    %c0_i32 = arith.constant 0 : i32
    %c0_i32_0 = arith.constant 0 : i32
    %c0_i32_1 = arith.constant 0 : i32
    return %c0_i32, %c0_i32_0 : i32, i32
  }
  func.func @transform_6(%arg0: i32, %arg1: i32, %arg2: memref<2xi32, #tpu.memory_space<smem>>, %arg3: memref<2xi32, #tpu.memory_space<smem>>) -> (i32, i32) {
    %c0_i32 = arith.constant 0 : i32
    %c0_i32_0 = arith.constant 0 : i32
    %c0_i32_1 = arith.constant 0 : i32
    return %c0_i32, %c0_i32_0 : i32, i32
  }
  func.func @transform_7(%arg0: i32, %arg1: i32, %arg2: memref<2xi32, #tpu.memory_space<smem>>, %arg3: memref<2xi32, #tpu.memory_space<smem>>) -> (i32, i32) {
    %c0_i32 = arith.constant 0 : i32
    %c0_i32_0 = arith.constant 0 : i32
    return %arg0, %c0_i32 : i32, i32
  }
}

</mosaic_0001>

<llo_original>
// kernel: tpu_custom_call.1
$region0: #{tpu_custom_call.1}
  #allocation0 [shape = 'u32[]', space=smem, size = 0x4, offset = 0x4, fixed_abs, tag = 'smem constant byte address 0x4 - core index']
  #allocation1 [shape = 'u32[72,128]{1,0:T(1,128)}', space=vmem, size = 0x9000, scoped, tag = 'internal scratch']
  #allocation2 [shape = 'f32[128,128]{1,0:T(8,128)}', space=vmem, size = 0x10000, scoped, tag = 'scratch operand']
  #allocation3 [shape = 's32[1]{0}', space=sflag, size = 0x4, scoped, tag = 'scoped memory for tpu_custom_call.1']
  #allocation4 [shape = 'u8[512]{0}', space=smem, size = 0x200, scoped, tag = 'prefetched SMEM operand 0']
  #allocation5 [shape = 'u8[512]{0}', space=smem, size = 0x200, scoped, tag = 'prefetched SMEM operand 1']
  %s0 = inlined_call_operand.vmem [shape: s32[2], index: 0, kind: input, shape index: {}]
  %s1 = inlined_call_operand.vmem [shape: s32[2], index: 1, kind: input, shape index: {}]
  %s2 = inlined_call_operand.vmem [shape: bf16[256,32], index: 2, kind: input, shape index: {}]
  %s3 = inlined_call_operand.vmem [shape: bf16[1536,64], index: 3, kind: input, shape index: {}]
  %s4 = inlined_call_operand.vmem [shape: s32[1,1536], index: 4, kind: input, shape index: {}]
  %s5 = inlined_call_operand.vmem [shape: f32[1536,1], index: 5, kind: input, shape index: {}]
  %s6 = inlined_call_operand.vmem [shape: bf16[64,128], index: 6, kind: input, shape index: {}]
  %s7 = inlined_call_operand.vmem [shape: f32[1,128], index: 7, kind: input, shape index: {}]
  %s8 = inlined_call_operand.vmem [shape: f32[1,128], index: 8, kind: input, shape index: {}]
  %s9 = inlined_call_operand.hbm [shape: f32[256,128], index: 9, kind: output, shape index: {}]
  %s10 = sld [smem:[#allocation0]]
  $region73: #{tpu_custom_call.1} parent=0
    _
  %s12 = ssub.s32 1, %s10
  %s13 = scalar_select 0, %s12, %s10
  %s15 = sshll.u32 %s0, 4
  %s16 = int_to_ptr.vmem [resolvable:$true] %s15
  %18 = dma.vmem_to_smem %s16, 16, [#allocation4], [#allocation3]
  %s20 = sshll.u32 %s1, 4
  %s21 = int_to_ptr.vmem [resolvable:$true] %s20
  %23 = dma.vmem_to_smem %s21, 16, [#allocation5], [#allocation3]
  %25 = dma.done [#allocation3], 32
  %26 = sfence
  $region1: #{tpu_custom_call.1} parent=0
    #allocation6 [shape = 'u8[131072]{0}', space=vmem, size = 0x20000, scoped, tag = 'output window, operand 0']
    #allocation7 [shape = 's32[2]{0}', space=sflag, size = 0x8, scoped, tag = 'scoped memory for tpu_custom_call.1']
    %27 = vsyncpa [#allocation7], 0
    %s28 = scalar_lea.sflag [#allocation7], 1
    %29 = vsyncpa %s28, 0
    loop: start=0, step=1, limit=6
    $region2: #{tpu_custom_call.1} parent=1 // loop_pre_header
      _
    $region3: #{tpu_custom_call.1} parent=1 // loop_header
      %s31 = sphi 0, %s35
      %p32 = scmp.ge.s32.totalorder %s31, 6
      %s38 = sphi 0, %s50
      %s39 = sphi 0, %s46
      %s40 = sphi 0, %s38
      %s41 = sphi 0, %s39
      %s42 = sphi 0, %s40
      %s43 = sphi 0, %s41
      %s53 = sphi 0, %s55
      %s56 = sphi 0, %s53
      %s57 = sphi 0, %s56
      %s73 = sphi 0, %s57
      %s95 = sphi 0, %s97
      %s98 = sphi 0, %s95
      %s99 = sphi 0, %s98
      %s115 = sphi 0, %s99
      %s137 = sphi 0, %s139
      %s140 = sphi 0, %s137
      %s141 = sphi 0, %s140
      %s157 = sphi 0, %s141
      %s179 = sphi 0, %s181
      %s182 = sphi 0, %s179
      %s183 = sphi 0, %s182
      %s199 = sphi 0, %s183
      %s203 = sphi 0, %s203
      %s205 = sphi 0, %s203
      %s206 = sphi 0, %s205
      %s220 = sphi 0, %s206
      %s224 = sphi 0, %s224
      %s226 = sphi 0, %s224
      %s227 = sphi 0, %s226
      %s241 = sphi 0, %s227
      %s245 = sphi 0, %s245
      %s247 = sphi 0, %s245
      %s248 = sphi 0, %s247
      %s262 = sphi 0, %s248
      %s268 = sphi 0, %s270
      %s271 = sphi 0, %s268
      %s272 = sphi 0, %s271
      %s288 = sphi 0, %s272
    $region4: #{tpu_custom_call.1} parent=1 // loop_header_branch
      %34 = sbr.rel (%p32) target = $region8
    $region5: #{tpu_custom_call.1} parent=1 // loop_body
      %s36 = ssub.s32 %s31, 1
      %s37 = ssub.s32 %s31, 2
      %s44 = sadd.s32 1, %s39
      %p45 = scmp.ge.s32.totalorder %s44, 2
      %s46 = scalar_select %p45, 0, %s44
      %s47 = sadd.s32 1, %s38
      %s48 = scalar_select %p45, %s47, %s38
      %p49 = scmp.ge.s32.totalorder %s48, 2
      %s50 = scalar_select %p49, 0, %s48
      %s51 = ssub.s32 %s38, %s50
      %p52 = scmp.eq.s32.totalorder %s51, 0
      %s54 = sadd.s32 %s53, 1
      %s55 = scalar_select %p52, %s53, %s54
      %p58 = pneg %p52
      %p59 = scmp.eq.s32.totalorder %s31, 3
      %p60 = por %p58, %p59
      %p61 = scmp.ne.s32.totalorder %s53, %s56
      %p62 = scmp.eq.s32.totalorder %s31, 0
      %p63 = por %p61, %p62
      %p64 = scmp.ne.s32.totalorder %s53, %s56
      %p65 = scmp.eq.s32.totalorder %s36, 3
      %p66 = por %p64, %p65
      %p67 = scmp.ne.s32.totalorder %s56, %s57
      %p68 = scmp.eq.s32.totalorder %s36, 0
      %p69 = por %p67, %p68
      %p70 = scmp.ne.s32.totalorder %s56, %s57
      %p71 = scmp.eq.s32.totalorder %s37, 3
      %p72 = por %p70, %p71
      %p74 = scmp.ne.s32.totalorder %s57, %s73
      %p75 = scmp.eq.s32.totalorder %s37, 0
      %p76 = por %p74, %p75
      %s77 = sld [smem:[#allocation4 + %s38]]
      %s78 = sld [smem:[#allocation5 + %s38]]
      %s79 = ssub.s32 %s78, 1
      %p80 = scmp.gt.s32.totalorder %s79, 0
      %s81 = scalar_select %p80, %s79, 0
      %p82 = scmp.lt.s32.totalorder %s39, %s81
      %s83 = scalar_select %p82, %s39, %s81
      %s84 = sadd.s32 %s77, %s83
      %s85 = sld [smem:[#allocation4 + %s50]]
      %s86 = sld [smem:[#allocation5 + %s50]]
      %s87 = ssub.s32 %s86, 1
      %p88 = scmp.gt.s32.totalorder %s87, 0
      %s89 = scalar_select %p88, %s87, 0
      %p90 = scmp.lt.s32.totalorder %s46, %s89
      %s91 = scalar_select %p90, %s46, %s89
      %s92 = sadd.s32 %s85, %s91
      %s93 = ssub.s32 %s84, %s92
      %p94 = scmp.eq.s32.totalorder %s93, 0
      %s96 = sadd.s32 %s95, 1
      %s97 = scalar_select %p94, %s95, %s96
      %p100 = pneg %p94
      %p101 = scmp.eq.s32.totalorder %s31, 3
      %p102 = por %p100, %p101
      %p103 = scmp.ne.s32.totalorder %s95, %s98
      %p104 = scmp.eq.s32.totalorder %s31, 0
      %p105 = por %p103, %p104
      %p106 = scmp.ne.s32.totalorder %s95, %s98
      %p107 = scmp.eq.s32.totalorder %s36, 3
      %p108 = por %p106, %p107
      %p109 = scmp.ne.s32.totalorder %s98, %s99
      %p110 = scmp.eq.s32.totalorder %s36, 0
      %p111 = por %p109, %p110
      %p112 = scmp.ne.s32.totalorder %s98, %s99
      %p113 = scmp.eq.s32.totalorder %s37, 3
      %p114 = por %p112, %p113
      %p116 = scmp.ne.s32.totalorder %s99, %s115
      %p117 = scmp.eq.s32.totalorder %s37, 0
      %p118 = por %p116, %p117
      %s119 = sld [smem:[#allocation4 + %s38]]
      %s120 = sld [smem:[#allocation5 + %s38]]
      %s121 = ssub.s32 %s120, 1
      %p122 = scmp.gt.s32.totalorder %s121, 0
      %s123 = scalar_select %p122, %s121, 0
      %p124 = scmp.lt.s32.totalorder %s39, %s123
      %s125 = scalar_select %p124, %s39, %s123
      %s126 = sadd.s32 %s119, %s125
      %s127 = sld [smem:[#allocation4 + %s50]]
      %s128 = sld [smem:[#allocation5 + %s50]]
      %s129 = ssub.s32 %s128, 1
      %p130 = scmp.gt.s32.totalorder %s129, 0
      %s131 = scalar_select %p130, %s129, 0
      %p132 = scmp.lt.s32.totalorder %s46, %s131
      %s133 = scalar_select %p132, %s46, %s131
      %s134 = sadd.s32 %s127, %s133
      %s135 = ssub.s32 %s126, %s134
      %p136 = scmp.eq.s32.totalorder %s135, 0
      %s138 = sadd.s32 %s137, 1
      %s139 = scalar_select %p136, %s137, %s138
      %p142 = pneg %p136
      %p143 = scmp.eq.s32.totalorder %s31, 3
      %p144 = por %p142, %p143
      %p145 = scmp.ne.s32.totalorder %s137, %s140
      %p146 = scmp.eq.s32.totalorder %s31, 0
      %p147 = por %p145, %p146
      %p148 = scmp.ne.s32.totalorder %s137, %s140
      %p149 = scmp.eq.s32.totalorder %s36, 3
      %p150 = por %p148, %p149
      %p151 = scmp.ne.s32.totalorder %s140, %s141
      %p152 = scmp.eq.s32.totalorder %s36, 0
      %p153 = por %p151, %p152
      %p154 = scmp.ne.s32.totalorder %s140, %s141
      %p155 = scmp.eq.s32.totalorder %s37, 3
      %p156 = por %p154, %p155
      %p158 = scmp.ne.s32.totalorder %s141, %s157
      %p159 = scmp.eq.s32.totalorder %s37, 0
      %p160 = por %p158, %p159
      %s161 = sld [smem:[#allocation4 + %s38]]
      %s162 = sld [smem:[#allocation5 + %s38]]
      %s163 = ssub.s32 %s162, 1
      %p164 = scmp.gt.s32.totalorder %s163, 0
      %s165 = scalar_select %p164, %s163, 0
      %p166 = scmp.lt.s32.totalorder %s39, %s165
      %s167 = scalar_select %p166, %s39, %s165
      %s168 = sadd.s32 %s161, %s167
      %s169 = sld [smem:[#allocation4 + %s50]]
      %s170 = sld [smem:[#allocation5 + %s50]]
      %s171 = ssub.s32 %s170, 1
      %p172 = scmp.gt.s32.totalorder %s171, 0
      %s173 = scalar_select %p172, %s171, 0
      %p174 = scmp.lt.s32.totalorder %s46, %s173
      %s175 = scalar_select %p174, %s46, %s173
      %s176 = sadd.s32 %s169, %s175
      %s177 = ssub.s32 %s168, %s176
      %p178 = scmp.eq.s32.totalorder %s177, 0
      %s180 = sadd.s32 %s179, 1
      %s181 = scalar_select %p178, %s179, %s180
      %p184 = pneg %p178
      %p185 = scmp.eq.s32.totalorder %s31, 3
      %p186 = por %p184, %p185
      %p187 = scmp.ne.s32.totalorder %s179, %s182
      %p188 = scmp.eq.s32.totalorder %s31, 0
      %p189 = por %p187, %p188
      %p190 = scmp.ne.s32.totalorder %s179, %s182
      %p191 = scmp.eq.s32.totalorder %s36, 3
      %p192 = por %p190, %p191
      %p193 = scmp.ne.s32.totalorder %s182, %s183
      %p194 = scmp.eq.s32.totalorder %s36, 0
      %p195 = por %p193, %p194
      %p196 = scmp.ne.s32.totalorder %s182, %s183
      %p197 = scmp.eq.s32.totalorder %s37, 3
      %p198 = por %p196, %p197
      %p200 = scmp.ne.s32.totalorder %s183, %s199
      %p201 = scmp.eq.s32.totalorder %s37, 0
      %p202 = por %p200, %p201
      %s204 = sadd.s32 %s203, 1
      %p207 = scmp.eq.s32.totalorder %s31, 3
      %p208 = scmp.ne.s32.totalorder %s203, %s205
      %p209 = scmp.eq.s32.totalorder %s31, 0
      %p210 = por %p208, %p209
      %p211 = scmp.ne.s32.totalorder %s203, %s205
      %p212 = scmp.eq.s32.totalorder %s36, 3
      %p213 = por %p211, %p212
      %p214 = scmp.ne.s32.totalorder %s205, %s206
      %p215 = scmp.eq.s32.totalorder %s36, 0
      %p216 = por %p214, %p215
      %p217 = scmp.ne.s32.totalorder %s205, %s206
      %p218 = scmp.eq.s32.totalorder %s37, 3
      %p219 = por %p217, %p218
      %p221 = scmp.ne.s32.totalorder %s206, %s220
      %p222 = scmp.eq.s32.totalorder %s37, 0
      %p223 = por %p221, %p222
      %s225 = sadd.s32 %s224, 1
      %p228 = scmp.eq.s32.totalorder %s31, 3
      %p229 = scmp.ne.s32.totalorder %s224, %s226
      %p230 = scmp.eq.s32.totalorder %s31, 0
      %p231 = por %p229, %p230
      %p232 = scmp.ne.s32.totalorder %s224, %s226
      %p233 = scmp.eq.s32.totalorder %s36, 3
      %p234 = por %p232, %p233
      %p235 = scmp.ne.s32.totalorder %s226, %s227
      %p236 = scmp.eq.s32.totalorder %s36, 0
      %p237 = por %p235, %p236
      %p238 = scmp.ne.s32.totalorder %s226, %s227
      %p239 = scmp.eq.s32.totalorder %s37, 3
      %p240 = por %p238, %p239
      %p242 = scmp.ne.s32.totalorder %s227, %s241
      %p243 = scmp.eq.s32.totalorder %s37, 0
      %p244 = por %p242, %p243
      %s246 = sadd.s32 %s245, 1
      %p249 = scmp.eq.s32.totalorder %s31, 3
      %p250 = scmp.ne.s32.totalorder %s245, %s247
      %p251 = scmp.eq.s32.totalorder %s31, 0
      %p252 = por %p250, %p251
      %p253 = scmp.ne.s32.totalorder %s245, %s247
      %p254 = scmp.eq.s32.totalorder %s36, 3
      %p255 = por %p253, %p254
      %p256 = scmp.ne.s32.totalorder %s247, %s248
      %p257 = scmp.eq.s32.totalorder %s36, 0
      %p258 = por %p256, %p257
      %p259 = scmp.ne.s32.totalorder %s247, %s248
      %p260 = scmp.eq.s32.totalorder %s37, 3
      %p261 = por %p259, %p260
      %p263 = scmp.ne.s32.totalorder %s248, %s262
      %p264 = scmp.eq.s32.totalorder %s37, 0
      %p265 = por %p263, %p264
      %s266 = ssub.s32 %s38, %s50
      %p267 = scmp.eq.s32.totalorder %s266, 0
      %s269 = sadd.s32 %s268, 1
      %s270 = scalar_select %p267, %s268, %s269
      %p273 = pneg %p267
      %p274 = scmp.eq.s32.totalorder %s31, 3
      %p275 = por %p273, %p274
      %p276 = scmp.ne.s32.totalorder %s268, %s271
      %p277 = scmp.eq.s32.totalorder %s31, 0
      %p278 = por %p276, %p277
      %p279 = scmp.ne.s32.totalorder %s268, %s271
      %p280 = scmp.eq.s32.totalorder %s36, 3
      %p281 = por %p279, %p280
      %p282 = scmp.ne.s32.totalorder %s271, %s272
      %p283 = scmp.eq.s32.totalorder %s36, 0
      %p284 = por %p282, %p283
      %p285 = scmp.ne.s32.totalorder %s271, %s272
      %p286 = scmp.eq.s32.totalorder %s37, 3
      %p287 = por %p285, %p286
      %p289 = scmp.ne.s32.totalorder %s272, %s288
      %p290 = scmp.eq.s32.totalorder %s37, 0
      %p291 = por %p289, %p290
      %p292 = scmp.le.s32.totalorder 1, %s31
      %p293 = scmp.lt.s32.totalorder %s31, 5
      %p294 = pnand %p292, %p293
      %p295 = pneg %p294
      // Predicated region
      $region9: #{tpu_custom_call.1} parent=5 // pred_check
        _
      $region10: #{tpu_custom_call.1} parent=5 // pred_check_branch
        %297 = sbr.rel (%p294) target = $region12
      $region11: #{tpu_custom_call.1} parent=5 // pred_region
        %s298 = ssub.s32 %s31, 1
        // Predicated region
        $region13: #{tpu_custom_call.1} parent=11 // pred_check
          %p299 = pneg %p216
        $region14: #{tpu_custom_call.1} parent=11 // pred_check_branch
          %301 = sbr.rel (%p299) target = $region16
        $region15: #{tpu_custom_call.1} parent=11 // pred_region
          _
        $region16: #{tpu_custom_call.1} parent=11 // pred_fallthru
          _
        // Predicated region
        $region17: #{tpu_custom_call.1} parent=11 // pred_check
          %p302 = pneg %p237
        $region18: #{tpu_custom_call.1} parent=11 // pred_check_branch
          %304 = sbr.rel (%p302) target = $region20
        $region19: #{tpu_custom_call.1} parent=11 // pred_region
          _
        $region20: #{tpu_custom_call.1} parent=11 // pred_fallthru
          _
        // Predicated region
        $region21: #{tpu_custom_call.1} parent=11 // pred_check
          %p305 = pneg %p258
        $region22: #{tpu_custom_call.1} parent=11 // pred_check_branch
          %307 = sbr.rel (%p305) target = $region24
        $region23: #{tpu_custom_call.1} parent=11 // pred_region
          _
        $region24: #{tpu_custom_call.1} parent=11 // pred_fallthru
          _
      $region12: #{tpu_custom_call.1} parent=5 // pred_fallthru
        _
      %p308 = scmp.lt.s32.totalorder %s31, 4
      // Predicated region
      $region25: #{tpu_custom_call.1} parent=5 // pred_check
        %p309 = pneg %p308
      $region26: #{tpu_custom_call.1} parent=5 // pred_check_branch
        %311 = sbr.rel (%p309) target = $region28
      $region27: #{tpu_custom_call.1} parent=5 // pred_region
        // Predicated region
        $region29: #{tpu_custom_call.1} parent=27 // pred_check
          %p312 = pneg %p63
        $region30: #{tpu_custom_call.1} parent=27 // pred_check_branch
          %314 = sbr.rel (%p312) target = $region32
        $region31: #{tpu_custom_call.1} parent=27 // pred_region
          %s315 = smul.u32 16, %s38
          %p316 = scmp.lt.s32.totalorder %s315, 31
          %s317 = scalar_select %p316, %s315, 31
          %s318 = smul.addr %s317, 4
          %s319 = scalar_lea.vmem %s2, %s318
          %s320 = smul.u32 16, %s38
        $region32: #{tpu_custom_call.1} parent=27 // pred_fallthru
          _
        // Predicated region
        $region33: #{tpu_custom_call.1} parent=27 // pred_check
          %p321 = pneg %p105
        $region34: #{tpu_custom_call.1} parent=27 // pred_check_branch
          %323 = sbr.rel (%p321) target = $region36
        $region35: #{tpu_custom_call.1} parent=27 // pred_region
          %s324 = sld [smem:[#allocation4 + %s38]]
          %s325 = sld [smem:[#allocation5 + %s38]]
          %s326 = ssub.s32 %s325, 1
          %p327 = scmp.gt.s32.totalorder %s326, 0
          %s328 = scalar_select %p327, %s326, 0
          %p329 = scmp.lt.s32.totalorder %s39, %s328
          %s330 = scalar_select %p329, %s39, %s328
          %s331 = sadd.s32 %s324, %s330
          %s332 = smul.u32 64, %s331
          %p333 = scmp.lt.s32.totalorder %s332, 191
          %s334 = scalar_select %p333, %s332, 191
          %s335 = smul.addr %s334, 4
          %s336 = scalar_lea.vmem %s3, %s335
          %s337 = sld [smem:[#allocation4 + %s38]]
          %s338 = sld [smem:[#allocation5 + %s38]]
          %s339 = ssub.s32 %s338, 1
          %p340 = scmp.gt.s32.totalorder %s339, 0
          %s341 = scalar_select %p340, %s339, 0
          %p342 = scmp.lt.s32.totalorder %s39, %s341
          %s343 = scalar_select %p342, %s39, %s341
          %s344 = sadd.s32 %s337, %s343
          %s345 = smul.u32 64, %s344
        $region36: #{tpu_custom_call.1} parent=27 // pred_fallthru
          _
        // Predicated region
        $region37: #{tpu_custom_call.1} parent=27 // pred_check
          %p346 = pneg %p147
        $region38: #{tpu_custom_call.1} parent=27 // pred_check_branch
          %348 = sbr.rel (%p346) target = $region40
        $region39: #{tpu_custom_call.1} parent=27 // pred_region
          %s349 = sld [smem:[#allocation4 + %s38]]
          %s350 = sld [smem:[#allocation5 + %s38]]
          %s351 = ssub.s32 %s350, 1
          %p352 = scmp.gt.s32.totalorder %s351, 0
          %s353 = scalar_select %p352, %s351, 0
          %p354 = scmp.lt.s32.totalorder %s39, %s353
          %s355 = scalar_select %p354, %s39, %s353
          %s356 = sadd.s32 %s349, %s355
          %s357 = smul.u32 4, %s356
          %p358 = scmp.lt.s32.totalorder %s357, 11
          %s359 = scalar_select %p358, %s357, 11
          %s360 = scalar_lea.vmem %s4, %s359
          %s361 = sld [smem:[#allocation4 + %s38]]
          %s362 = sld [smem:[#allocation5 + %s38]]
          %s363 = ssub.s32 %s362, 1
          %p364 = scmp.gt.s32.totalorder %s363, 0
          %s365 = scalar_select %p364, %s363, 0
          %p366 = scmp.lt.s32.totalorder %s39, %s365
          %s367 = scalar_select %p366, %s39, %s365
          %s368 = sadd.s32 %s361, %s367
          %s369 = smul.u32 4, %s368
        $region40: #{tpu_custom_call.1} parent=27 // pred_fallthru
          _
        // Predicated region
        $region41: #{tpu_custom_call.1} parent=27 // pred_check
          %p370 = pneg %p189
        $region42: #{tpu_custom_call.1} parent=27 // pred_check_branch
          %372 = sbr.rel (%p370) target = $region44
        $region43: #{tpu_custom_call.1} parent=27 // pred_region
          %s373 = sld [smem:[#allocation4 + %s38]]
          %s374 = sld [smem:[#allocation5 + %s38]]
          %s375 = ssub.s32 %s374, 1
          %p376 = scmp.gt.s32.totalorder %s375, 0
          %s377 = scalar_select %p376, %s375, 0
          %p378 = scmp.lt.s32.totalorder %s39, %s377
          %s379 = scalar_select %p378, %s39, %s377
          %s380 = sadd.s32 %s373, %s379
          %s381 = smul.u32 64, %s380
          %p382 = scmp.lt.s32.totalorder %s381, 191
          %s383 = scalar_select %p382, %s381, 191
          %s384 = smul.addr %s383, 8
          %s385 = scalar_lea.vmem %s5, %s384
          %s386 = sld [smem:[#allocation4 + %s38]]
          %s387 = sld [smem:[#allocation5 + %s38]]
          %s388 = ssub.s32 %s387, 1
          %p389 = scmp.gt.s32.totalorder %s388, 0
          %s390 = scalar_select %p389, %s388, 0
          %p391 = scmp.lt.s32.totalorder %s39, %s390
          %s392 = scalar_select %p391, %s39, %s390
          %s393 = sadd.s32 %s386, %s392
          %s394 = smul.u32 64, %s393
        $region44: #{tpu_custom_call.1} parent=27 // pred_fallthru
          _
      $region28: #{tpu_custom_call.1} parent=5 // pred_fallthru
        _
      %p395 = scmp.le.s32.totalorder 1, %s31
      %p396 = scmp.lt.s32.totalorder %s31, 5
      %p397 = pnand %p395, %p396
      %p398 = pneg %p397
      // Predicated region
      $region45: #{tpu_custom_call.1} parent=5 // pred_check
        _
      $region46: #{tpu_custom_call.1} parent=5 // pred_check_branch
        %400 = sbr.rel (%p397) target = $region48
      $region47: #{tpu_custom_call.1} parent=5 // pred_region
        %s401 = ssub.s32 %s31, 1
        %s402 = smul.u32 16, %s40
        %p403 = scmp.lt.s32.totalorder %s402, 31
        %s404 = scalar_select %p403, %s402, 31
        %s405 = smul.addr %s404, 4
        %s406 = scalar_lea.vmem %s2, %s405
        %p407 = pneg %p69
        %p408 = pneg %p66
        %s409 = sld [smem:[#allocation4 + %s40]]
        %s410 = sld [smem:[#allocation5 + %s40]]
        %s411 = ssub.s32 %s410, 1
        %p412 = scmp.gt.s32.totalorder %s411, 0
        %s413 = scalar_select %p412, %s411, 0
        %p414 = scmp.lt.s32.totalorder %s41, %s413
        %s415 = scalar_select %p414, %s41, %s413
        %s416 = sadd.s32 %s409, %s415
        %s417 = smul.u32 64, %s416
        %p418 = scmp.lt.s32.totalorder %s417, 191
        %s419 = scalar_select %p418, %s417, 191
        %s420 = smul.addr %s419, 4
        %s421 = scalar_lea.vmem %s3, %s420
        %p422 = pneg %p111
        %p423 = pneg %p108
        %s424 = sld [smem:[#allocation4 + %s40]]
        %s425 = sld [smem:[#allocation5 + %s40]]
        %s426 = ssub.s32 %s425, 1
        %p427 = scmp.gt.s32.totalorder %s426, 0
        %s428 = scalar_select %p427, %s426, 0
        %p429 = scmp.lt.s32.totalorder %s41, %s428
        %s430 = scalar_select %p429, %s41, %s428
        %s431 = sadd.s32 %s424, %s430
        %s432 = smul.u32 4, %s431
        %p433 = scmp.lt.s32.totalorder %s432, 11
        %s434 = scalar_select %p433, %s432, 11
        %s435 = scalar_lea.vmem %s4, %s434
        %p436 = pneg %p153
        %p437 = pneg %p150
        %s438 = sld [smem:[#allocation4 + %s40]]
        %s439 = sld [smem:[#allocation5 + %s40]]
        %s440 = ssub.s32 %s439, 1
        %p441 = scmp.gt.s32.totalorder %s440, 0
        %s442 = scalar_select %p441, %s440, 0
        %p443 = scmp.lt.s32.totalorder %s41, %s442
        %s444 = scalar_select %p443, %s41, %s442
        %s445 = sadd.s32 %s438, %s444
        %s446 = smul.u32 64, %s445
        %p447 = scmp.lt.s32.totalorder %s446, 191
        %s448 = scalar_select %p447, %s446, 191
        %s449 = smul.addr %s448, 8
        %s450 = scalar_lea.vmem %s5, %s449
        %p451 = pneg %p195
        %p452 = pneg %p192
        %p453 = pneg %p216
        %p454 = pneg %p213
        %p455 = pneg %p237
        %p456 = pneg %p234
        %p457 = pneg %p258
        %p458 = pneg %p255
        %p459 = pneg %p284
        %p460 = pneg %p281
        %s461 = sand.u32 %s271, 1
        %s462 = scalar_lea.sflag [#allocation7], %s461
        %s463 = sand.u32 %s271, 1
        %s464 = smul.addr %s463, 128
        %s465 = scalar_lea.vmem [#allocation6], %s464
        %s466 = smul.u32 16, %s40
        %p467 = scmp.lt.s32.totalorder %s466, 31
        %s468 = scalar_select %p467, %s466, 31
        %s469 = smul.addr %s468, 4
        %s470 = scalar_lea.vmem %s2, %s469
        %s471 = smul.u32 16, %s40
        %s472 = sld [smem:[#allocation4 + %s40]]
        %s473 = sld [smem:[#allocation5 + %s40]]
        %s474 = ssub.s32 %s473, 1
        %p475 = scmp.gt.s32.totalorder %s474, 0
        %s476 = scalar_select %p475, %s474, 0
        %p477 = scmp.lt.s32.totalorder %s41, %s476
        %s478 = scalar_select %p477, %s41, %s476
        %s479 = sadd.s32 %s472, %s478
        %s480 = smul.u32 64, %s479
        %p481 = scmp.lt.s32.totalorder %s480, 191
        %s482 = scalar_select %p481, %s480, 191
        %s483 = smul.addr %s482, 4
        %s484 = scalar_lea.vmem %s3, %s483
        %s485 = sld [smem:[#allocation4 + %s40]]
        %s486 = sld [smem:[#allocation5 + %s40]]
        %s487 = ssub.s32 %s486, 1
        %p488 = scmp.gt.s32.totalorder %s487, 0
        %s489 = scalar_select %p488, %s487, 0
        %p490 = scmp.lt.s32.totalorder %s41, %s489
        %s491 = scalar_select %p490, %s41, %s489
        %s492 = sadd.s32 %s485, %s491
        %s493 = smul.u32 64, %s492
        %s494 = sld [smem:[#allocation4 + %s40]]
        %s495 = sld [smem:[#allocation5 + %s40]]
        %s496 = ssub.s32 %s495, 1
        %p497 = scmp.gt.s32.totalorder %s496, 0
        %s498 = scalar_select %p497, %s496, 0
        %p499 = scmp.lt.s32.totalorder %s41, %s498
        %s500 = scalar_select %p499, %s41, %s498
        %s501 = sadd.s32 %s494, %s500
        %s502 = smul.u32 4, %s501
        %p503 = scmp.lt.s32.totalorder %s502, 11
        %s504 = scalar_select %p503, %s502, 11
        %s505 = scalar_lea.vmem %s4, %s504
        %s506 = sld [smem:[#allocation4 + %s40]]
        %s507 = sld [smem:[#allocation5 + %s40]]
        %s508 = ssub.s32 %s507, 1
        %p509 = scmp.gt.s32.totalorder %s508, 0
        %s510 = scalar_select %p509, %s508, 0
        %p511 = scmp.lt.s32.totalorder %s41, %s510
        %s512 = scalar_select %p511, %s41, %s510
        %s513 = sadd.s32 %s506, %s512
        %s514 = smul.u32 4, %s513
        %s515 = sld [smem:[#allocation4 + %s40]]
        %s516 = sld [smem:[#allocation5 + %s40]]
        %s517 = ssub.s32 %s516, 1
        %p518 = scmp.gt.s32.totalorder %s517, 0
        %s519 = scalar_select %p518, %s517, 0
        %p520 = scmp.lt.s32.totalorder %s41, %s519
        %s521 = scalar_select %p520, %s41, %s519
        %s522 = sadd.s32 %s515, %s521
        %s523 = smul.u32 64, %s522
        %p524 = scmp.lt.s32.totalorder %s523, 191
        %s525 = scalar_select %p524, %s523, 191
        %s526 = smul.addr %s525, 8
        %s527 = scalar_lea.vmem %s5, %s526
        %s528 = sld [smem:[#allocation4 + %s40]]
        %s529 = sld [smem:[#allocation5 + %s40]]
        %s530 = ssub.s32 %s529, 1
        %p531 = scmp.gt.s32.totalorder %s530, 0
        %s532 = scalar_select %p531, %s530, 0
        %p533 = scmp.lt.s32.totalorder %s41, %s532
        %s534 = scalar_select %p533, %s41, %s532
        %s535 = sadd.s32 %s528, %s534
        %s536 = smul.u32 64, %s535
        %s537 = smul.u32 16, %s40
        %p539 = scmp.eq.s32.totalorder %s41, 0
        // Predicated region
        $region49: #{tpu_custom_call.1} parent=47 // pred_check
          %p540 = pneg %p539
        $region50: #{tpu_custom_call.1} parent=47 // pred_check_branch
          %542 = sbr.rel (%p540) target = $region52
        $region51: #{tpu_custom_call.1} parent=47 // pred_region
          %v543 = vld [vmem:[%s6] sm:$0xf]
          %v544 = vld [vmem:[%s6 + $0x4] sm:$0xf]
          %v545 = vld [vmem:[%s6 + $0x8] sm:$0xf]
          %v546 = vld [vmem:[%s6 + $0xc] sm:$0xf]
          %v547 = vld [vmem:[%s470] sm:$0xf]
          %v548 = vld [vmem:[%s470 + $0x4] sm:$0xf]
          %v549 = vld [vmem:[%s470 + $0x8] sm:$0xf]
          %v550 = vld [vmem:[%s470 + $0xc] sm:$0xf]
          %v551 = vld [vmem:[%s470 + $0x10] sm:$0xf]
          %v552 = vld [vmem:[%s470 + $0x14] sm:$0xf]
          %v553 = vld [vmem:[%s470 + $0x18] sm:$0xf]
          %v554 = vld [vmem:[%s470 + $0x1c] sm:$0xf]
          %v555 = vld [vmem:[%s470 + $0x20] sm:$0xf]
          %v556 = vld [vmem:[%s470 + $0x24] sm:$0xf]
          %v557 = vld [vmem:[%s470 + $0x28] sm:$0xf]
          %v558 = vld [vmem:[%s470 + $0x2c] sm:$0xf]
          %v559 = vld [vmem:[%s470 + $0x30] sm:$0xf]
          %v560 = vld [vmem:[%s470 + $0x34] sm:$0xf]
          %v561 = vld [vmem:[%s470 + $0x38] sm:$0xf]
          %v562 = vld [vmem:[%s470 + $0x3c] sm:$0xf]
          %v563 = vld [vmem:[%s7] sm:$0x1]
          %v565 = vperm.slane %v563, 0
          %v583 = vunpack.c.l.b16 %v547
          %v584 = vunpack.c.l.b16 %v548
          %v585 = vunpack.c.l.b16 %v549
          %v586 = vunpack.c.l.b16 %v550
          %v587 = vunpack.c.l.b16 %v551
          %v588 = vunpack.c.l.b16 %v552
          %v589 = vunpack.c.l.b16 %v553
          %v590 = vunpack.c.l.b16 %v554
          %v591 = vunpack.c.l.b16 %v555
          %v592 = vunpack.c.l.b16 %v556
          %v593 = vunpack.c.l.b16 %v557
          %v594 = vunpack.c.l.b16 %v558
          %v595 = vunpack.c.l.b16 %v559
          %v596 = vunpack.c.l.b16 %v560
          %v597 = vunpack.c.l.b16 %v561
          %v598 = vunpack.c.l.b16 %v562
          %v599 = vpack.c.b16 %v584, %v583
          %v600 = vpack.c.b16 %v586, %v585
          %v601 = vpack.c.b16 %v588, %v587
          %v602 = vpack.c.b16 %v590, %v589
          %v603 = vpack.c.b16 %v592, %v591
          %v604 = vpack.c.b16 %v594, %v593
          %v605 = vpack.c.b16 %v596, %v595
          %v606 = vpack.c.b16 %v598, %v597
          %v611 = vunpack.c.l.b16 %v543
          %v612 = vunpack.c.l.b16 %v544
          %v613 = vunpack.c.l.b16 %v545
          %v614 = vunpack.c.l.b16 %v546
          %v615 = vpack.c.b16 %v612, %v611
          %v616 = vpack.c.b16 %v614, %v613
          %vm619 = vcmask 261120
          %v621 = vsel %vm619, %v599, 0
          %v624 = vsel %vm619, %v600, 0
          %v627 = vsel %vm619, %v601, 0
          %v630 = vsel %vm619, %v602, 0
          %v633 = vsel %vm619, %v603, 0
          %v636 = vsel %vm619, %v604, 0
          %v639 = vsel %vm619, %v605, 0
          %v642 = vsel %vm619, %v606, 0
          %644 = vmatpush.bf16.msra.mxu0 0
          %645 = vmatpush.bf16.msra.mxu0 0
          %646 = vmatpush.bf16.msra.mxu0 0
          %647 = vmatpush.bf16.msra.mxu0 0
          %648 = vmatpush.bf16.msra.mxu0 0
          %649 = vmatpush.bf16.msra.mxu0 0
          %650 = vmatpush.bf16.msra.mxu0 %v616
          %651 = vmatpush.bf16.msra.mxu0 %v615
          %652 = vmatmul.bf16.gmra.mxu0 %v621
          %v653 = vpop.f32.mrf.mxu0
          %v654 = vadd.f32 %v565, %v653
          %v655 = vpop.f32.mrf.mxu0
          %v656 = vadd.f32 %v565, %v655
          %657 = vmatmul.bf16.gmra.mxu0 %v624
          %v658 = vpop.f32.mrf.mxu0
          %v659 = vadd.f32 %v565, %v658
          %v660 = vpop.f32.mrf.mxu0
          %v661 = vadd.f32 %v565, %v660
          %662 = vmatmul.bf16.gmra.mxu0 %v627
          %v663 = vpop.f32.mrf.mxu0
          %v664 = vadd.f32 %v565, %v663
          %v665 = vpop.f32.mrf.mxu0
          %v666 = vadd.f32 %v565, %v665
          %667 = vmatmul.bf16.gmra.mxu0 %v630
          %v668 = vpop.f32.mrf.mxu0
          %v669 = vadd.f32 %v565, %v668
          %v670 = vpop.f32.mrf.mxu0
          %v671 = vadd.f32 %v565, %v670
          %672 = vmatmul.bf16.gmra.mxu0 %v633
          %v673 = vpop.f32.mrf.mxu0
          %v674 = vadd.f32 %v565, %v673
          %v675 = vpop.f32.mrf.mxu0
          %v676 = vadd.f32 %v565, %v675
          %677 = vmatmul.bf16.gmra.mxu0 %v636
          %v678 = vpop.f32.mrf.mxu0
          %v679 = vadd.f32 %v565, %v678
          %v680 = vpop.f32.mrf.mxu0
          %v681 = vadd.f32 %v565, %v680
          %682 = vmatmul.bf16.gmra.mxu0 %v639
          %v683 = vpop.f32.mrf.mxu0
          %v684 = vadd.f32 %v565, %v683
          %v685 = vpop.f32.mrf.mxu0
          %v686 = vadd.f32 %v565, %v685
          %687 = vmatmul.bf16.gmra.mxu0 %v642
          %v688 = vpop.f32.mrf.mxu0
          %v689 = vadd.f32 %v565, %v688
          %v690 = vpop.f32.mrf.mxu0
          %v691 = vadd.f32 %v565, %v690
          %692 = vdwg.mxu0
          %693 = vst [vmem:[#allocation2] sm:$0xff] %v654
          %694 = vst [vmem:[#allocation2 + $0x8] sm:$0xff] %v656
          %695 = vst [vmem:[#allocation2 + $0x10] sm:$0xff] %v659
          %696 = vst [vmem:[#allocation2 + $0x18] sm:$0xff] %v661
          %697 = vst [vmem:[#allocation2 + $0x20] sm:$0xff] %v664
          %698 = vst [vmem:[#allocation2 + $0x28] sm:$0xff] %v666
          %699 = vst [vmem:[#allocation2 + $0x30] sm:$0xff] %v669
          %700 = vst [vmem:[#allocation2 + $0x38] sm:$0xff] %v671
          %701 = vst [vmem:[#allocation2 + $0x40] sm:$0xff] %v674
          %702 = vst [vmem:[#allocation2 + $0x48] sm:$0xff] %v676
          %703 = vst [vmem:[#allocation2 + $0x50] sm:$0xff] %v679
          %704 = vst [vmem:[#allocation2 + $0x58] sm:$0xff] %v681
          %705 = vst [vmem:[#allocation2 + $0x60] sm:$0xff] %v684
          %706 = vst [vmem:[#allocation2 + $0x68] sm:$0xff] %v686
          %707 = vst [vmem:[#allocation2 + $0x70] sm:$0xff] %v689
          %708 = vst [vmem:[#allocation2 + $0x78] sm:$0xff] %v691
        $region52: #{tpu_custom_call.1} parent=47 // pred_fallthru
          _
        %s709 = sld [smem:[#allocation5 + %s40]]
        %p710 = scmp.lt.s32.totalorder %s41, %s709
        // Predicated region
        $region53: #{tpu_custom_call.1} parent=47 // pred_check
          %p711 = pneg %p710
        $region54: #{tpu_custom_call.1} parent=47 // pred_check_branch
          %713 = sbr.rel (%p711) target = $region56
        $region55: #{tpu_custom_call.1} parent=47 // pred_region
          %v714 = vld [vmem:[%s484] sm:$0xf]
          %v715 = vld [vmem:[%s484 + $0x4] sm:$0xf]
          %v716 = vld [vmem:[%s484 + $0x8] sm:$0xf]
          %v717 = vld [vmem:[%s484 + $0xc] sm:$0xf]
          %v718 = vld [vmem:[%s484 + $0x10] sm:$0xf]
          %v719 = vld [vmem:[%s484 + $0x14] sm:$0xf]
          %v720 = vld [vmem:[%s484 + $0x18] sm:$0xf]
          %v721 = vld [vmem:[%s484 + $0x1c] sm:$0xf]
          %v722 = vld [vmem:[%s484 + $0x20] sm:$0xf]
          %v723 = vld [vmem:[%s484 + $0x24] sm:$0xf]
          %v724 = vld [vmem:[%s484 + $0x28] sm:$0xf]
          %v725 = vld [vmem:[%s484 + $0x2c] sm:$0xf]
          %v726 = vld [vmem:[%s484 + $0x30] sm:$0xf]
          %v727 = vld [vmem:[%s484 + $0x34] sm:$0xf]
          %v728 = vld [vmem:[%s484 + $0x38] sm:$0xf]
          %v729 = vld [vmem:[%s484 + $0x3c] sm:$0xf]
          %v730 = vld [vmem:[%s484 + $0x40] sm:$0xf]
          %v731 = vld [vmem:[%s484 + $0x44] sm:$0xf]
          %v732 = vld [vmem:[%s484 + $0x48] sm:$0xf]
          %v733 = vld [vmem:[%s484 + $0x4c] sm:$0xf]
          %v734 = vld [vmem:[%s484 + $0x50] sm:$0xf]
          %v735 = vld [vmem:[%s484 + $0x54] sm:$0xf]
          %v736 = vld [vmem:[%s484 + $0x58] sm:$0xf]
          %v737 = vld [vmem:[%s484 + $0x5c] sm:$0xf]
          %v738 = vld [vmem:[%s484 + $0x60] sm:$0xf]
          %v739 = vld [vmem:[%s484 + $0x64] sm:$0xf]
          %v740 = vld [vmem:[%s484 + $0x68] sm:$0xf]
          %v741 = vld [vmem:[%s484 + $0x6c] sm:$0xf]
          %v742 = vld [vmem:[%s484 + $0x70] sm:$0xf]
          %v743 = vld [vmem:[%s484 + $0x74] sm:$0xf]
          %v744 = vld [vmem:[%s484 + $0x78] sm:$0xf]
          %v745 = vld [vmem:[%s484 + $0x7c] sm:$0xf]
          %v746 = vld [vmem:[%s484 + $0x80] sm:$0xf]
          %v747 = vld [vmem:[%s484 + $0x84] sm:$0xf]
          %v748 = vld [vmem:[%s484 + $0x88] sm:$0xf]
          %v749 = vld [vmem:[%s484 + $0x8c] sm:$0xf]
          %v750 = vld [vmem:[%s484 + $0x90] sm:$0xf]
          %v751 = vld [vmem:[%s484 + $0x94] sm:$0xf]
          %v752 = vld [vmem:[%s484 + $0x98] sm:$0xf]
          %v753 = vld [vmem:[%s484 + $0x9c] sm:$0xf]
          %v754 = vld [vmem:[%s484 + $0xa0] sm:$0xf]
          %v755 = vld [vmem:[%s484 + $0xa4] sm:$0xf]
          %v756 = vld [vmem:[%s484 + $0xa8] sm:$0xf]
          %v757 = vld [vmem:[%s484 + $0xac] sm:$0xf]
          %v758 = vld [vmem:[%s484 + $0xb0] sm:$0xf]
          %v759 = vld [vmem:[%s484 + $0xb4] sm:$0xf]
          %v760 = vld [vmem:[%s484 + $0xb8] sm:$0xf]
          %v761 = vld [vmem:[%s484 + $0xbc] sm:$0xf]
          %v762 = vld [vmem:[%s484 + $0xc0] sm:$0xf]
          %v763 = vld [vmem:[%s484 + $0xc4] sm:$0xf]
          %v764 = vld [vmem:[%s484 + $0xc8] sm:$0xf]
          %v765 = vld [vmem:[%s484 + $0xcc] sm:$0xf]
          %v766 = vld [vmem:[%s484 + $0xd0] sm:$0xf]
          %v767 = vld [vmem:[%s484 + $0xd4] sm:$0xf]
          %v768 = vld [vmem:[%s484 + $0xd8] sm:$0xf]
          %v769 = vld [vmem:[%s484 + $0xdc] sm:$0xf]
          %v770 = vld [vmem:[%s484 + $0xe0] sm:$0xf]
          %v771 = vld [vmem:[%s484 + $0xe4] sm:$0xf]
          %v772 = vld [vmem:[%s484 + $0xe8] sm:$0xf]
          %v773 = vld [vmem:[%s484 + $0xec] sm:$0xf]
          %v774 = vld [vmem:[%s484 + $0xf0] sm:$0xf]
          %v775 = vld [vmem:[%s484 + $0xf4] sm:$0xf]
          %v776 = vld [vmem:[%s484 + $0xf8] sm:$0xf]
          %v777 = vld [vmem:[%s484 + $0xfc] sm:$0xf]
          %v778 = vld [vmem:[%s6] sm:$0xf]
          %v779 = vld [vmem:[%s6 + $0x4] sm:$0xf]
          %v780 = vld [vmem:[%s6 + $0x8] sm:$0xf]
          %v781 = vld [vmem:[%s6 + $0xc] sm:$0xf]
          %v782 = vld [vmem:[%s6 + $0x10] sm:$0xf]
          %v783 = vld [vmem:[%s6 + $0x14] sm:$0xf]
          %v784 = vld [vmem:[%s6 + $0x18] sm:$0xf]
          %v785 = vld [vmem:[%s6 + $0x1c] sm:$0xf]
          %v786 = vld [vmem:[%s8] sm:$0x1]
          %v788 = vperm.slane %v786, 0
          %v854 = vunpack.c.l.b16 %v714
          %v855 = vunpack.c.l.b16 %v715
          %v856 = vunpack.c.l.b16 %v716
          %v857 = vunpack.c.l.b16 %v717
          %v858 = vunpack.c.l.b16 %v718
          %v859 = vunpack.c.l.b16 %v719
          %v860 = vunpack.c.l.b16 %v720
          %v861 = vunpack.c.l.b16 %v721
          %v862 = vunpack.c.l.b16 %v722
          %v863 = vunpack.c.l.b16 %v723
          %v864 = vunpack.c.l.b16 %v724
          %v865 = vunpack.c.l.b16 %v725
          %v866 = vunpack.c.l.b16 %v726
          %v867 = vunpack.c.l.b16 %v727
          %v868 = vunpack.c.l.b16 %v728
          %v869 = vunpack.c.l.b16 %v729
          %v870 = vunpack.c.l.b16 %v730
          %v871 = vunpack.c.l.b16 %v731
          %v872 = vunpack.c.l.b16 %v732
          %v873 = vunpack.c.l.b16 %v733
          %v874 = vunpack.c.l.b16 %v734
          %v875 = vunpack.c.l.b16 %v735
          %v876 = vunpack.c.l.b16 %v736
          %v877 = vunpack.c.l.b16 %v737
          %v878 = vunpack.c.l.b16 %v738
          %v879 = vunpack.c.l.b16 %v739
          %v880 = vunpack.c.l.b16 %v740
          %v881 = vunpack.c.l.b16 %v741
          %v882 = vunpack.c.l.b16 %v742
          %v883 = vunpack.c.l.b16 %v743
          %v884 = vunpack.c.l.b16 %v744
          %v885 = vunpack.c.l.b16 %v745
          %v886 = vunpack.c.l.b16 %v746
          %v887 = vunpack.c.l.b16 %v747
          %v888 = vunpack.c.l.b16 %v748
          %v889 = vunpack.c.l.b16 %v749
          %v890 = vunpack.c.l.b16 %v750
          %v891 = vunpack.c.l.b16 %v751
          %v892 = vunpack.c.l.b16 %v752
          %v893 = vunpack.c.l.b16 %v753
          %v894 = vunpack.c.l.b16 %v754
          %v895 = vunpack.c.l.b16 %v755
          %v896 = vunpack.c.l.b16 %v756
          %v897 = vunpack.c.l.b16 %v757
          %v898 = vunpack.c.l.b16 %v758
          %v899 = vunpack.c.l.b16 %v759
          %v900 = vunpack.c.l.b16 %v760
          %v901 = vunpack.c.l.b16 %v761
          %v902 = vunpack.c.l.b16 %v762
          %v903 = vunpack.c.l.b16 %v763
          %v904 = vunpack.c.l.b16 %v764
          %v905 = vunpack.c.l.b16 %v765
          %v906 = vunpack.c.l.b16 %v766
          %v907 = vunpack.c.l.b16 %v767
          %v908 = vunpack.c.l.b16 %v768
          %v909 = vunpack.c.l.b16 %v769
          %v910 = vunpack.c.l.b16 %v770
          %v911 = vunpack.c.l.b16 %v771
          %v912 = vunpack.c.l.b16 %v772
          %v913 = vunpack.c.l.b16 %v773
          %v914 = vunpack.c.l.b16 %v774
          %v915 = vunpack.c.l.b16 %v775
          %v916 = vunpack.c.l.b16 %v776
          %v917 = vunpack.c.l.b16 %v777
          %v918 = vpack.c.b16 %v855, %v854
          %v919 = vpack.c.b16 %v857, %v856
          %v920 = vpack.c.b16 %v859, %v858
          %v921 = vpack.c.b16 %v861, %v860
          %v922 = vpack.c.b16 %v863, %v862
          %v923 = vpack.c.b16 %v865, %v864
          %v924 = vpack.c.b16 %v867, %v866
          %v925 = vpack.c.b16 %v869, %v868
          %v926 = vpack.c.b16 %v871, %v870
          %v927 = vpack.c.b16 %v873, %v872
          %v928 = vpack.c.b16 %v875, %v874
          %v929 = vpack.c.b16 %v877, %v876
          %v930 = vpack.c.b16 %v879, %v878
          %v931 = vpack.c.b16 %v881, %v880
          %v932 = vpack.c.b16 %v883, %v882
          %v933 = vpack.c.b16 %v885, %v884
          %v934 = vpack.c.b16 %v887, %v886
          %v935 = vpack.c.b16 %v889, %v888
          %v936 = vpack.c.b16 %v891, %v890
          %v937 = vpack.c.b16 %v893, %v892
          %v938 = vpack.c.b16 %v895, %v894
          %v939 = vpack.c.b16 %v897, %v896
          %v940 = vpack.c.b16 %v899, %v898
          %v941 = vpack.c.b16 %v901, %v900
          %v942 = vpack.c.b16 %v903, %v902
          %v943 = vpack.c.b16 %v905, %v904
          %v944 = vpack.c.b16 %v907, %v906
          %v945 = vpack.c.b16 %v909, %v908
          %v946 = vpack.c.b16 %v911, %v910
          %v947 = vpack.c.b16 %v913, %v912
          %v948 = vpack.c.b16 %v915, %v914
          %v949 = vpack.c.b16 %v917, %v916
          %v958 = vunpack.c.l.b16 %v778
          %v959 = vunpack.c.l.b16 %v779
          %v960 = vunpack.c.l.b16 %v780
          %v961 = vunpack.c.l.b16 %v781
          %v962 = vunpack.c.l.b16 %v782
          %v963 = vunpack.c.l.b16 %v783
          %v964 = vunpack.c.l.b16 %v784
          %v965 = vunpack.c.l.b16 %v785
          %v966 = vpack.c.b16 %v959, %v958
          %v967 = vpack.c.b16 %v961, %v960
          %v968 = vpack.c.b16 %v963, %v962
          %v969 = vpack.c.b16 %v965, %v964
          %vm974 = vcmask 523264
          %v976 = vsel %vm974, %v918, 0
          %v979 = vsel %vm974, %v919, 0
          %v982 = vsel %vm974, %v920, 0
          %v985 = vsel %vm974, %v921, 0
          %v988 = vsel %vm974, %v922, 0
          %v991 = vsel %vm974, %v923, 0
          %v994 = vsel %vm974, %v924, 0
          %v997 = vsel %vm974, %v925, 0
          %v1000 = vsel %vm974, %v926, 0
          %v1003 = vsel %vm974, %v927, 0
          %v1006 = vsel %vm974, %v928, 0
          %v1009 = vsel %vm974, %v929, 0
          %v1012 = vsel %vm974, %v930, 0
          %v1015 = vsel %vm974, %v931, 0
          %v1018 = vsel %vm974, %v932, 0
          %v1021 = vsel %vm974, %v933, 0
          %v1024 = vsel %vm974, %v934, 0
          %v1027 = vsel %vm974, %v935, 0
          %v1030 = vsel %vm974, %v936, 0
          %v1033 = vsel %vm974, %v937, 0
          %v1036 = vsel %vm974, %v938, 0
          %v1039 = vsel %vm974, %v939, 0
          %v1042 = vsel %vm974, %v940, 0
          %v1045 = vsel %vm974, %v941, 0
          %v1048 = vsel %vm974, %v942, 0
          %v1051 = vsel %vm974, %v943, 0
          %v1054 = vsel %vm974, %v944, 0
          %v1057 = vsel %vm974, %v945, 0
          %v1060 = vsel %vm974, %v946, 0
          %v1063 = vsel %vm974, %v947, 0
          %v1066 = vsel %vm974, %v948, 0
          %v1069 = vsel %vm974, %v949, 0
          %1071 = vmatpush.bf16.msra.mxu0 0
          %1072 = vmatpush.bf16.msra.mxu0 0
          %1073 = vmatpush.bf16.msra.mxu0 0
          %1074 = vmatpush.bf16.msra.mxu0 0
          %1075 = vmatpush.bf16.msra.mxu0 %v969
          %1076 = vmatpush.bf16.msra.mxu0 %v968
          %1077 = vmatpush.bf16.msra.mxu0 %v967
          %1078 = vmatpush.bf16.msra.mxu0 %v966
          %1079 = vmatmul.bf16.gmra.mxu0 %v976
          %v1080 = vpop.f32.mrf.mxu0
          %v1081 = vadd.f32 %v788, %v1080
          %v1082 = vpop.f32.mrf.mxu0
          %v1083 = vadd.f32 %v788, %v1082
          %1084 = vmatmul.bf16.gmra.mxu0 %v979
          %v1085 = vpop.f32.mrf.mxu0
          %v1086 = vadd.f32 %v788, %v1085
          %v1087 = vpop.f32.mrf.mxu0
          %v1088 = vadd.f32 %v788, %v1087
          %1089 = vmatmul.bf16.gmra.mxu0 %v982
          %v1090 = vpop.f32.mrf.mxu0
          %v1091 = vadd.f32 %v788, %v1090
          %v1092 = vpop.f32.mrf.mxu0
          %v1093 = vadd.f32 %v788, %v1092
          %1094 = vmatmul.bf16.gmra.mxu0 %v985
          %v1095 = vpop.f32.mrf.mxu0
          %v1096 = vadd.f32 %v788, %v1095
          %v1097 = vpop.f32.mrf.mxu0
          %v1098 = vadd.f32 %v788, %v1097
          %1099 = vmatmul.bf16.gmra.mxu0 %v988
          %v1100 = vpop.f32.mrf.mxu0
          %v1101 = vadd.f32 %v788, %v1100
          %v1102 = vpop.f32.mrf.mxu0
          %v1103 = vadd.f32 %v788, %v1102
          %1104 = vmatmul.bf16.gmra.mxu0 %v991
          %v1105 = vpop.f32.mrf.mxu0
          %v1106 = vadd.f32 %v788, %v1105
          %v1107 = vpop.f32.mrf.mxu0
          %v1108 = vadd.f32 %v788, %v1107
          %1109 = vmatmul.bf16.gmra.mxu0 %v994
          %v1110 = vpop.f32.mrf.mxu0
          %v1111 = vadd.f32 %v788, %v1110
          %v1112 = vpop.f32.mrf.mxu0
          %v1113 = vadd.f32 %v788, %v1112
          %1114 = vmatmul.bf16.gmra.mxu0 %v997
          %v1115 = vpop.f32.mrf.mxu0
          %v1116 = vadd.f32 %v788, %v1115
          %v1117 = vpop.f32.mrf.mxu0
          %v1118 = vadd.f32 %v788, %v1117
          %1119 = vmatmul.bf16.gmra.mxu0 %v1000
          %v1120 = vpop.f32.mrf.mxu0
          %v1121 = vadd.f32 %v788, %v1120
          %v1122 = vpop.f32.mrf.mxu0
          %v1123 = vadd.f32 %v788, %v1122
          %1124 = vmatmul.bf16.gmra.mxu0 %v1003
          %v1125 = vpop.f32.mrf.mxu0
          %v1126 = vadd.f32 %v788, %v1125
          %v1127 = vpop.f32.mrf.mxu0
          %v1128 = vadd.f32 %v788, %v1127
          %1129 = vmatmul.bf16.gmra.mxu0 %v1006
          %v1130 = vpop.f32.mrf.mxu0
          %v1131 = vadd.f32 %v788, %v1130
          %v1132 = vpop.f32.mrf.mxu0
          %v1133 = vadd.f32 %v788, %v1132
          %1134 = vmatmul.bf16.gmra.mxu0 %v1009
          %v1135 = vpop.f32.mrf.mxu0
          %v1136 = vadd.f32 %v788, %v1135
          %v1137 = vpop.f32.mrf.mxu0
          %v1138 = vadd.f32 %v788, %v1137
          %1139 = vmatmul.bf16.gmra.mxu0 %v1012
          %v1140 = vpop.f32.mrf.mxu0
          %v1141 = vadd.f32 %v788, %v1140
          %v1142 = vpop.f32.mrf.mxu0
          %v1143 = vadd.f32 %v788, %v1142
          %1144 = vmatmul.bf16.gmra.mxu0 %v1015
          %v1145 = vpop.f32.mrf.mxu0
          %v1146 = vadd.f32 %v788, %v1145
          %v1147 = vpop.f32.mrf.mxu0
          %v1148 = vadd.f32 %v788, %v1147
          %1149 = vmatmul.bf16.gmra.mxu0 %v1018
          %v1150 = vpop.f32.mrf.mxu0
          %v1151 = vadd.f32 %v788, %v1150
          %v1152 = vpop.f32.mrf.mxu0
          %v1153 = vadd.f32 %v788, %v1152
          %1154 = vmatmul.bf16.gmra.mxu0 %v1021
          %v1155 = vpop.f32.mrf.mxu0
          %v1156 = vadd.f32 %v788, %v1155
          %v1157 = vpop.f32.mrf.mxu0
          %v1158 = vadd.f32 %v788, %v1157
          %1159 = vmatmul.bf16.gmra.mxu0 %v1024
          %v1160 = vpop.f32.mrf.mxu0
          %v1161 = vadd.f32 %v788, %v1160
          %v1162 = vpop.f32.mrf.mxu0
          %v1163 = vadd.f32 %v788, %v1162
          %1164 = vmatmul.bf16.gmra.mxu0 %v1027
          %v1165 = vpop.f32.mrf.mxu0
          %v1166 = vadd.f32 %v788, %v1165
          %v1167 = vpop.f32.mrf.mxu0
          %v1168 = vadd.f32 %v788, %v1167
          %1169 = vmatmul.bf16.gmra.mxu0 %v1030
          %v1170 = vpop.f32.mrf.mxu0
          %v1171 = vadd.f32 %v788, %v1170
          %v1172 = vpop.f32.mrf.mxu0
          %v1173 = vadd.f32 %v788, %v1172
          %1174 = vmatmul.bf16.gmra.mxu0 %v1033
          %v1175 = vpop.f32.mrf.mxu0
          %v1176 = vadd.f32 %v788, %v1175
          %v1177 = vpop.f32.mrf.mxu0
          %v1178 = vadd.f32 %v788, %v1177
          %1179 = vmatmul.bf16.gmra.mxu0 %v1036
          %v1180 = vpop.f32.mrf.mxu0
          %v1181 = vadd.f32 %v788, %v1180
          %v1182 = vpop.f32.mrf.mxu0
          %v1183 = vadd.f32 %v788, %v1182
          %1184 = vmatmul.bf16.gmra.mxu0 %v1039
          %v1185 = vpop.f32.mrf.mxu0
          %v1186 = vadd.f32 %v788, %v1185
          %v1187 = vpop.f32.mrf.mxu0
          %v1188 = vadd.f32 %v788, %v1187
          %1189 = vmatmul.bf16.gmra.mxu0 %v1042
          %v1190 = vpop.f32.mrf.mxu0
          %v1191 = vadd.f32 %v788, %v1190
          %v1192 = vpop.f32.mrf.mxu0
          %v1193 = vadd.f32 %v788, %v1192
          %1194 = vmatmul.bf16.gmra.mxu0 %v1045
          %v1195 = vpop.f32.mrf.mxu0
          %v1196 = vadd.f32 %v788, %v1195
          %v1197 = vpop.f32.mrf.mxu0
          %v1198 = vadd.f32 %v788, %v1197
          %1199 = vmatmul.bf16.gmra.mxu0 %v1048
          %v1200 = vpop.f32.mrf.mxu0
          %v1201 = vadd.f32 %v788, %v1200
          %v1202 = vpop.f32.mrf.mxu0
          %v1203 = vadd.f32 %v788, %v1202
          %1204 = vmatmul.bf16.gmra.mxu0 %v1051
          %v1205 = vpop.f32.mrf.mxu0
          %v1206 = vadd.f32 %v788, %v1205
          %v1207 = vpop.f32.mrf.mxu0
          %v1208 = vadd.f32 %v788, %v1207
          %1209 = vmatmul.bf16.gmra.mxu0 %v1054
          %v1210 = vpop.f32.mrf.mxu0
          %v1211 = vadd.f32 %v788, %v1210
          %v1212 = vpop.f32.mrf.mxu0
          %v1213 = vadd.f32 %v788, %v1212
          %1214 = vmatmul.bf16.gmra.mxu0 %v1057
          %v1215 = vpop.f32.mrf.mxu0
          %v1216 = vadd.f32 %v788, %v1215
          %v1217 = vpop.f32.mrf.mxu0
          %v1218 = vadd.f32 %v788, %v1217
          %1219 = vmatmul.bf16.gmra.mxu0 %v1060
          %v1220 = vpop.f32.mrf.mxu0
          %v1221 = vadd.f32 %v788, %v1220
          %v1222 = vpop.f32.mrf.mxu0
          %v1223 = vadd.f32 %v788, %v1222
          %1224 = vmatmul.bf16.gmra.mxu0 %v1063
          %v1225 = vpop.f32.mrf.mxu0
          %v1226 = vadd.f32 %v788, %v1225
          %v1227 = vpop.f32.mrf.mxu0
          %v1228 = vadd.f32 %v788, %v1227
          %1229 = vmatmul.bf16.gmra.mxu0 %v1066
          %v1230 = vpop.f32.mrf.mxu0
          %v1231 = vadd.f32 %v788, %v1230
          %v1232 = vpop.f32.mrf.mxu0
          %v1233 = vadd.f32 %v788, %v1232
          %1234 = vmatmul.bf16.gmra.mxu0 %v1069
          %v1235 = vpop.f32.mrf.mxu0
          %v1236 = vadd.f32 %v788, %v1235
          %v1237 = vpop.f32.mrf.mxu0
          %v1238 = vadd.f32 %v788, %v1237
          %1239 = vdwg.mxu0
          %v1240 = vld [vmem:[%s527] sm:$0xff]
          %v1241 = vld [vmem:[%s527 + $0x8] sm:$0xff]
          %v1242 = vld [vmem:[%s527 + $0x10] sm:$0xff]
          %v1243 = vld [vmem:[%s527 + $0x18] sm:$0xff]
          %v1244 = vld [vmem:[%s527 + $0x20] sm:$0xff]
          %v1245 = vld [vmem:[%s527 + $0x28] sm:$0xff]
          %v1246 = vld [vmem:[%s527 + $0x30] sm:$0xff]
          %v1247 = vld [vmem:[%s527 + $0x38] sm:$0xff]
          %v1248 = vld [vmem:[%s527 + $0x40] sm:$0xff]
          %v1249 = vld [vmem:[%s527 + $0x48] sm:$0xff]
          %v1250 = vld [vmem:[%s527 + $0x50] sm:$0xff]
          %v1251 = vld [vmem:[%s527 + $0x58] sm:$0xff]
          %v1252 = vld [vmem:[%s527 + $0x60] sm:$0xff]
          %v1253 = vld [vmem:[%s527 + $0x68] sm:$0xff]
          %v1254 = vld [vmem:[%s527 + $0x70] sm:$0xff]
          %v1255 = vld [vmem:[%s527 + $0x78] sm:$0xff]
          %v1256 = vld [vmem:[%s527 + $0x80] sm:$0xff]
          %v1257 = vld [vmem:[%s527 + $0x88] sm:$0xff]
          %v1258 = vld [vmem:[%s527 + $0x90] sm:$0xff]
          %v1259 = vld [vmem:[%s527 + $0x98] sm:$0xff]
          %v1260 = vld [vmem:[%s527 + $0xa0] sm:$0xff]
          %v1261 = vld [vmem:[%s527 + $0xa8] sm:$0xff]
          %v1262 = vld [vmem:[%s527 + $0xb0] sm:$0xff]
          %v1263 = vld [vmem:[%s527 + $0xb8] sm:$0xff]
          %v1264 = vld [vmem:[%s527 + $0xc0] sm:$0xff]
          %v1265 = vld [vmem:[%s527 + $0xc8] sm:$0xff]
          %v1266 = vld [vmem:[%s527 + $0xd0] sm:$0xff]
          %v1267 = vld [vmem:[%s527 + $0xd8] sm:$0xff]
          %v1268 = vld [vmem:[%s527 + $0xe0] sm:$0xff]
          %v1269 = vld [vmem:[%s527 + $0xe8] sm:$0xff]
          %v1270 = vld [vmem:[%s527 + $0xf0] sm:$0xff]
          %v1271 = vld [vmem:[%s527 + $0xf8] sm:$0xff]
          %v1272 = vld [vmem:[%s527 + $0x100] sm:$0xff]
          %v1273 = vld [vmem:[%s527 + $0x108] sm:$0xff]
          %v1274 = vld [vmem:[%s527 + $0x110] sm:$0xff]
          %v1275 = vld [vmem:[%s527 + $0x118] sm:$0xff]
          %v1276 = vld [vmem:[%s527 + $0x120] sm:$0xff]
          %v1277 = vld [vmem:[%s527 + $0x128] sm:$0xff]
          %v1278 = vld [vmem:[%s527 + $0x130] sm:$0xff]
          %v1279 = vld [vmem:[%s527 + $0x138] sm:$0xff]
          %v1280 = vld [vmem:[%s527 + $0x140] sm:$0xff]
          %v1281 = vld [vmem:[%s527 + $0x148] sm:$0xff]
          %v1282 = vld [vmem:[%s527 + $0x150] sm:$0xff]
          %v1283 = vld [vmem:[%s527 + $0x158] sm:$0xff]
          %v1284 = vld [vmem:[%s527 + $0x160] sm:$0xff]
          %v1285 = vld [vmem:[%s527 + $0x168] sm:$0xff]
          %v1286 = vld [vmem:[%s527 + $0x170] sm:$0xff]
          %v1287 = vld [vmem:[%s527 + $0x178] sm:$0xff]
          %v1288 = vld [vmem:[%s527 + $0x180] sm:$0xff]
          %v1289 = vld [vmem:[%s527 + $0x188] sm:$0xff]
          %v1290 = vld [vmem:[%s527 + $0x190] sm:$0xff]
          %v1291 = vld [vmem:[%s527 + $0x198] sm:$0xff]
          %v1292 = vld [vmem:[%s527 + $0x1a0] sm:$0xff]
          %v1293 = vld [vmem:[%s527 + $0x1a8] sm:$0xff]
          %v1294 = vld [vmem:[%s527 + $0x1b0] sm:$0xff]
          %v1295 = vld [vmem:[%s527 + $0x1b8] sm:$0xff]
          %v1296 = vld [vmem:[%s527 + $0x1c0] sm:$0xff]
          %v1297 = vld [vmem:[%s527 + $0x1c8] sm:$0xff]
          %v1298 = vld [vmem:[%s527 + $0x1d0] sm:$0xff]
          %v1299 = vld [vmem:[%s527 + $0x1d8] sm:$0xff]
          %v1300 = vld [vmem:[%s527 + $0x1e0] sm:$0xff]
          %v1301 = vld [vmem:[%s527 + $0x1e8] sm:$0xff]
          %v1302 = vld [vmem:[%s527 + $0x1f0] sm:$0xff]
          %v1303 = vld [vmem:[%s527 + $0x1f8] sm:$0xff]
          %1305 = vset.pattern.permute.xlu0 0
          %1306 = vperm.xlu0 %1305, %v1240
          %v1307 = vpop.permute.xlu0 %1306
          %1310 = vset.pattern.permute.xlu0 0
          %1311 = vperm.xlu0 %1310, %v1241
          %v1312 = vpop.permute.xlu0 %1311
          %1315 = vset.pattern.permute.xlu0 0
          %1316 = vperm.xlu0 %1315, %v1242
          %v1317 = vpop.permute.xlu0 %1316
          %1320 = vset.pattern.permute.xlu0 0
          %1321 = vperm.xlu0 %1320, %v1243
          %v1322 = vpop.permute.xlu0 %1321
          %1325 = vset.pattern.permute.xlu0 0
          %1326 = vperm.xlu0 %1325, %v1244
          %v1327 = vpop.permute.xlu0 %1326
          %1330 = vset.pattern.permute.xlu0 0
          %1331 = vperm.xlu0 %1330, %v1245
          %v1332 = vpop.permute.xlu0 %1331
          %1335 = vset.pattern.permute.xlu0 0
          %1336 = vperm.xlu0 %1335, %v1246
          %v1337 = vpop.permute.xlu0 %1336
          %1340 = vset.pattern.permute.xlu0 0
          %1341 = vperm.xlu0 %1340, %v1247
          %v1342 = vpop.permute.xlu0 %1341
          %1345 = vset.pattern.permute.xlu0 0
          %1346 = vperm.xlu0 %1345, %v1248
          %v1347 = vpop.permute.xlu0 %1346
          %1350 = vset.pattern.permute.xlu0 0
          %1351 = vperm.xlu0 %1350, %v1249
          %v1352 = vpop.permute.xlu0 %1351
          %1355 = vset.pattern.permute.xlu0 0
          %1356 = vperm.xlu0 %1355, %v1250
          %v1357 = vpop.permute.xlu0 %1356
          %1360 = vset.pattern.permute.xlu0 0
          %1361 = vperm.xlu0 %1360, %v1251
          %v1362 = vpop.permute.xlu0 %1361
          %1365 = vset.pattern.permute.xlu0 0
          %1366 = vperm.xlu0 %1365, %v1252
          %v1367 = vpop.permute.xlu0 %1366
          %1370 = vset.pattern.permute.xlu0 0
          %1371 = vperm.xlu0 %1370, %v1253
          %v1372 = vpop.permute.xlu0 %1371
          %1375 = vset.pattern.permute.xlu0 0
          %1376 = vperm.xlu0 %1375, %v1254
          %v1377 = vpop.permute.xlu0 %1376
          %1380 = vset.pattern.permute.xlu0 0
          %1381 = vperm.xlu0 %1380, %v1255
          %v1382 = vpop.permute.xlu0 %1381
          %1385 = vset.pattern.permute.xlu0 0
          %1386 = vperm.xlu0 %1385, %v1256
          %v1387 = vpop.permute.xlu0 %1386
          %1390 = vset.pattern.permute.xlu0 0
          %1391 = vperm.xlu0 %1390, %v1257
          %v1392 = vpop.permute.xlu0 %1391
          %1395 = vset.pattern.permute.xlu0 0
          %1396 = vperm.xlu0 %1395, %v1258
          %v1397 = vpop.permute.xlu0 %1396
          %1400 = vset.pattern.permute.xlu0 0
          %1401 = vperm.xlu0 %1400, %v1259
          %v1402 = vpop.permute.xlu0 %1401
          %1405 = vset.pattern.permute.xlu0 0
          %1406 = vperm.xlu0 %1405, %v1260
          %v1407 = vpop.permute.xlu0 %1406
          %1410 = vset.pattern.permute.xlu0 0
          %1411 = vperm.xlu0 %1410, %v1261
          %v1412 = vpop.permute.xlu0 %1411
          %1415 = vset.pattern.permute.xlu0 0
          %1416 = vperm.xlu0 %1415, %v1262
          %v1417 = vpop.permute.xlu0 %1416
          %1420 = vset.pattern.permute.xlu0 0
          %1421 = vperm.xlu0 %1420, %v1263
          %v1422 = vpop.permute.xlu0 %1421
          %1425 = vset.pattern.permute.xlu0 0
          %1426 = vperm.xlu0 %1425, %v1264
          %v1427 = vpop.permute.xlu0 %1426
          %1430 = vset.pattern.permute.xlu0 0
          %1431 = vperm.xlu0 %1430, %v1265
          %v1432 = vpop.permute.xlu0 %1431
          %1435 = vset.pattern.permute.xlu0 0
          %1436 = vperm.xlu0 %1435, %v1266
          %v1437 = vpop.permute.xlu0 %1436
          %1440 = vset.pattern.permute.xlu0 0
          %1441 = vperm.xlu0 %1440, %v1267
          %v1442 = vpop.permute.xlu0 %1441
          %1445 = vset.pattern.permute.xlu0 0
          %1446 = vperm.xlu0 %1445, %v1268
          %v1447 = vpop.permute.xlu0 %1446
          %1450 = vset.pattern.permute.xlu0 0
          %1451 = vperm.xlu0 %1450, %v1269
          %v1452 = vpop.permute.xlu0 %1451
          %1455 = vset.pattern.permute.xlu0 0
          %1456 = vperm.xlu0 %1455, %v1270
          %v1457 = vpop.permute.xlu0 %1456
          %1460 = vset.pattern.permute.xlu0 0
          %1461 = vperm.xlu0 %1460, %v1271
          %v1462 = vpop.permute.xlu0 %1461
          %1465 = vset.pattern.permute.xlu0 0
          %1466 = vperm.xlu0 %1465, %v1272
          %v1467 = vpop.permute.xlu0 %1466
          %1470 = vset.pattern.permute.xlu0 0
          %1471 = vperm.xlu0 %1470, %v1273
          %v1472 = vpop.permute.xlu0 %1471
          %1475 = vset.pattern.permute.xlu0 0
          %1476 = vperm.xlu0 %1475, %v1274
          %v1477 = vpop.permute.xlu0 %1476
          %1480 = vset.pattern.permute.xlu0 0
          %1481 = vperm.xlu0 %1480, %v1275
          %v1482 = vpop.permute.xlu0 %1481
          %1485 = vset.pattern.permute.xlu0 0
          %1486 = vperm.xlu0 %1485, %v1276
          %v1487 = vpop.permute.xlu0 %1486
          %1490 = vset.pattern.permute.xlu0 0
          %1491 = vperm.xlu0 %1490, %v1277
          %v1492 = vpop.permute.xlu0 %1491
          %1495 = vset.pattern.permute.xlu0 0
          %1496 = vperm.xlu0 %1495, %v1278
          %v1497 = vpop.permute.xlu0 %1496
          %1500 = vset.pattern.permute.xlu0 0
          %1501 = vperm.xlu0 %1500, %v1279
          %v1502 = vpop.permute.xlu0 %1501
          %1505 = vset.pattern.permute.xlu0 0
          %1506 = vperm.xlu0 %1505, %v1280
          %v1507 = vpop.permute.xlu0 %1506
          %1510 = vset.pattern.permute.xlu0 0
          %1511 = vperm.xlu0 %1510, %v1281
          %v1512 = vpop.permute.xlu0 %1511
          %1515 = vset.pattern.permute.xlu0 0
          %1516 = vperm.xlu0 %1515, %v1282
          %v1517 = vpop.permute.xlu0 %1516
          %1520 = vset.pattern.permute.xlu0 0
          %1521 = vperm.xlu0 %1520, %v1283
          %v1522 = vpop.permute.xlu0 %1521
          %1525 = vset.pattern.permute.xlu0 0
          %1526 = vperm.xlu0 %1525, %v1284
          %v1527 = vpop.permute.xlu0 %1526
          %1530 = vset.pattern.permute.xlu0 0
          %1531 = vperm.xlu0 %1530, %v1285
          %v1532 = vpop.permute.xlu0 %1531
          %1535 = vset.pattern.permute.xlu0 0
          %1536 = vperm.xlu0 %1535, %v1286
          %v1537 = vpop.permute.xlu0 %1536
          %1540 = vset.pattern.permute.xlu0 0
          %1541 = vperm.xlu0 %1540, %v1287
          %v1542 = vpop.permute.xlu0 %1541
          %1545 = vset.pattern.permute.xlu0 0
          %1546 = vperm.xlu0 %1545, %v1288
          %v1547 = vpop.permute.xlu0 %1546
          %1550 = vset.pattern.permute.xlu0 0
          %1551 = vperm.xlu0 %1550, %v1289
          %v1552 = vpop.permute.xlu0 %1551
          %1555 = vset.pattern.permute.xlu0 0
          %1556 = vperm.xlu0 %1555, %v1290
          %v1557 = vpop.permute.xlu0 %1556
          %1560 = vset.pattern.permute.xlu0 0
          %1561 = vperm.xlu0 %1560, %v1291
          %v1562 = vpop.permute.xlu0 %1561
          %1565 = vset.pattern.permute.xlu0 0
          %1566 = vperm.xlu0 %1565, %v1292
          %v1567 = vpop.permute.xlu0 %1566
          %1570 = vset.pattern.permute.xlu0 0
          %1571 = vperm.xlu0 %1570, %v1293
          %v1572 = vpop.permute.xlu0 %1571
          %1575 = vset.pattern.permute.xlu0 0
          %1576 = vperm.xlu0 %1575, %v1294
          %v1577 = vpop.permute.xlu0 %1576
          %1580 = vset.pattern.permute.xlu0 0
          %1581 = vperm.xlu0 %1580, %v1295
          %v1582 = vpop.permute.xlu0 %1581
          %1585 = vset.pattern.permute.xlu0 0
          %1586 = vperm.xlu0 %1585, %v1296
          %v1587 = vpop.permute.xlu0 %1586
          %1590 = vset.pattern.permute.xlu0 0
          %1591 = vperm.xlu0 %1590, %v1297
          %v1592 = vpop.permute.xlu0 %1591
          %1595 = vset.pattern.permute.xlu0 0
          %1596 = vperm.xlu0 %1595, %v1298
          %v1597 = vpop.permute.xlu0 %1596
          %1600 = vset.pattern.permute.xlu0 0
          %1601 = vperm.xlu0 %1600, %v1299
          %v1602 = vpop.permute.xlu0 %1601
          %1605 = vset.pattern.permute.xlu0 0
          %1606 = vperm.xlu0 %1605, %v1300
          %v1607 = vpop.permute.xlu0 %1606
          %1610 = vset.pattern.permute.xlu0 0
          %1611 = vperm.xlu0 %1610, %v1301
          %v1612 = vpop.permute.xlu0 %1611
          %1615 = vset.pattern.permute.xlu0 0
          %1616 = vperm.xlu0 %1615, %v1302
          %v1617 = vpop.permute.xlu0 %1616
          %1620 = vset.pattern.permute.xlu0 0
          %1621 = vperm.xlu0 %1620, %v1303
          %v1622 = vpop.permute.xlu0 %1621
          %v1624 = vmul.f32 %v1081, %v1307
          %v1625 = vmul.f32 %v1083, %v1312
          %v1626 = vmul.f32 %v1086, %v1317
          %v1627 = vmul.f32 %v1088, %v1322
          %v1628 = vmul.f32 %v1091, %v1327
          %v1629 = vmul.f32 %v1093, %v1332
          %v1630 = vmul.f32 %v1096, %v1337
          %v1631 = vmul.f32 %v1098, %v1342
          %v1632 = vmul.f32 %v1101, %v1347
          %v1633 = vmul.f32 %v1103, %v1352
          %v1634 = vmul.f32 %v1106, %v1357
          %v1635 = vmul.f32 %v1108, %v1362
          %v1636 = vmul.f32 %v1111, %v1367
          %v1637 = vmul.f32 %v1113, %v1372
          %v1638 = vmul.f32 %v1116, %v1377
          %v1639 = vmul.f32 %v1118, %v1382
          %v1640 = vmul.f32 %v1121, %v1387
          %v1641 = vmul.f32 %v1123, %v1392
          %v1642 = vmul.f32 %v1126, %v1397
          %v1643 = vmul.f32 %v1128, %v1402
          %v1644 = vmul.f32 %v1131, %v1407
          %v1645 = vmul.f32 %v1133, %v1412
          %v1646 = vmul.f32 %v1136, %v1417
          %v1647 = vmul.f32 %v1138, %v1422
          %v1648 = vmul.f32 %v1141, %v1427
          %v1649 = vmul.f32 %v1143, %v1432
          %v1650 = vmul.f32 %v1146, %v1437
          %v1651 = vmul.f32 %v1148, %v1442
          %v1652 = vmul.f32 %v1151, %v1447
          %v1653 = vmul.f32 %v1153, %v1452
          %v1654 = vmul.f32 %v1156, %v1457
          %v1655 = vmul.f32 %v1158, %v1462
          %v1656 = vmul.f32 %v1161, %v1467
          %v1657 = vmul.f32 %v1163, %v1472
          %v1658 = vmul.f32 %v1166, %v1477
          %v1659 = vmul.f32 %v1168, %v1482
          %v1660 = vmul.f32 %v1171, %v1487
          %v1661 = vmul.f32 %v1173, %v1492
          %v1662 = vmul.f32 %v1176, %v1497
          %v1663 = vmul.f32 %v1178, %v1502
          %v1664 = vmul.f32 %v1181, %v1507
          %v1665 = vmul.f32 %v1183, %v1512
          %v1666 = vmul.f32 %v1186, %v1517
          %v1667 = vmul.f32 %v1188, %v1522
          %v1668 = vmul.f32 %v1191, %v1527
          %v1669 = vmul.f32 %v1193, %v1532
          %v1670 = vmul.f32 %v1196, %v1537
          %v1671 = vmul.f32 %v1198, %v1542
          %v1672 = vmul.f32 %v1201, %v1547
          %v1673 = vmul.f32 %v1203, %v1552
          %v1674 = vmul.f32 %v1206, %v1557
          %v1675 = vmul.f32 %v1208, %v1562
          %v1676 = vmul.f32 %v1211, %v1567
          %v1677 = vmul.f32 %v1213, %v1572
          %v1678 = vmul.f32 %v1216, %v1577
          %v1679 = vmul.f32 %v1218, %v1582
          %v1680 = vmul.f32 %v1221, %v1587
          %v1681 = vmul.f32 %v1223, %v1592
          %v1682 = vmul.f32 %v1226, %v1597
          %v1683 = vmul.f32 %v1228, %v1602
          %v1684 = vmul.f32 %v1231, %v1607
          %v1685 = vmul.f32 %v1233, %v1612
          %v1686 = vmul.f32 %v1236, %v1617
          %v1687 = vmul.f32 %v1238, %v1622
          %s1688 = smul.u32 %s40, 128
          %v1689 = vlaneseq
          %v1690 = vshrl.u32 %v1689, 7
          %v1691 = vadd.s32 %v1690, 8
          %v1692 = vadd.s32 %v1690, 16
          %v1693 = vadd.s32 %v1690, 24
          %v1694 = vadd.s32 %v1690, 32
          %v1695 = vadd.s32 %v1690, 40
          %v1696 = vadd.s32 %v1690, 48
          %v1697 = vadd.s32 %v1690, 56
          %v1698 = vadd.s32 %v1690, 64
          %v1699 = vadd.s32 %v1690, 72
          %v1700 = vadd.s32 %v1690, 80
          %v1701 = vadd.s32 %v1690, 88
          %v1702 = vadd.s32 %v1690, 96
          %v1703 = vadd.s32 %v1690, 104
          %v1704 = vadd.s32 %v1690, 112
          %v1705 = vadd.s32 %v1690, 120
          %v1706 = vstv %s1688
          %v1707 = vadd.s32 %v1706, %v1690
          %v1708 = vadd.s32 %v1706, %v1691
          %v1709 = vadd.s32 %v1706, %v1692
          %v1710 = vadd.s32 %v1706, %v1693
          %v1711 = vadd.s32 %v1706, %v1694
          %v1712 = vadd.s32 %v1706, %v1695
          %v1713 = vadd.s32 %v1706, %v1696
          %v1714 = vadd.s32 %v1706, %v1697
          %v1715 = vadd.s32 %v1706, %v1698
          %v1716 = vadd.s32 %v1706, %v1699
          %v1717 = vadd.s32 %v1706, %v1700
          %v1718 = vadd.s32 %v1706, %v1701
          %v1719 = vadd.s32 %v1706, %v1702
          %v1720 = vadd.s32 %v1706, %v1703
          %v1721 = vadd.s32 %v1706, %v1704
          %v1722 = vadd.s32 %v1706, %v1705
          %v1723 = vld [vmem:[%s505] sm:$0xf]
          %v1724 = vperm.slane %v1723, 0
          %v1725 = vperm.slane %v1723, 1
          %v1726 = vperm.slane %v1723, 2
          %v1727 = vperm.slane %v1723, 3
          %vm1728 = vcmp.eq.s32.totalorder %v1707, %v1724
          %vm1729 = vcmp.eq.s32.totalorder %v1707, %v1725
          %vm1730 = vcmp.eq.s32.totalorder %v1707, %v1726
          %vm1731 = vcmp.eq.s32.totalorder %v1707, %v1727
          %vm1732 = vcmp.eq.s32.totalorder %v1708, %v1724
          %vm1733 = vcmp.eq.s32.totalorder %v1708, %v1725
          %vm1734 = vcmp.eq.s32.totalorder %v1708, %v1726
          %vm1735 = vcmp.eq.s32.totalorder %v1708, %v1727
          %vm1736 = vcmp.eq.s32.totalorder %v1709, %v1724
          %vm1737 = vcmp.eq.s32.totalorder %v1709, %v1725
          %vm1738 = vcmp.eq.s32.totalorder %v1709, %v1726
          %vm1739 = vcmp.eq.s32.totalorder %v1709, %v1727
          %vm1740 = vcmp.eq.s32.totalorder %v1710, %v1724
          %vm1741 = vcmp.eq.s32.totalorder %v1710, %v1725
          %vm1742 = vcmp.eq.s32.totalorder %v1710, %v1726
          %vm1743 = vcmp.eq.s32.totalorder %v1710, %v1727
          %vm1744 = vcmp.eq.s32.totalorder %v1711, %v1724
          %vm1745 = vcmp.eq.s32.totalorder %v1711, %v1725
          %vm1746 = vcmp.eq.s32.totalorder %v1711, %v1726
          %vm1747 = vcmp.eq.s32.totalorder %v1711, %v1727
          %vm1748 = vcmp.eq.s32.totalorder %v1712, %v1724
          %vm1749 = vcmp.eq.s32.totalorder %v1712, %v1725
          %vm1750 = vcmp.eq.s32.totalorder %v1712, %v1726
          %vm1751 = vcmp.eq.s32.totalorder %v1712, %v1727
          %vm1752 = vcmp.eq.s32.totalorder %v1713, %v1724
          %vm1753 = vcmp.eq.s32.totalorder %v1713, %v1725
          %vm1754 = vcmp.eq.s32.totalorder %v1713, %v1726
          %vm1755 = vcmp.eq.s32.totalorder %v1713, %v1727
          %vm1756 = vcmp.eq.s32.totalorder %v1714, %v1724
          %vm1757 = vcmp.eq.s32.totalorder %v1714, %v1725
          %vm1758 = vcmp.eq.s32.totalorder %v1714, %v1726
          %vm1759 = vcmp.eq.s32.totalorder %v1714, %v1727
          %vm1760 = vcmp.eq.s32.totalorder %v1715, %v1724
          %vm1761 = vcmp.eq.s32.totalorder %v1715, %v1725
          %vm1762 = vcmp.eq.s32.totalorder %v1715, %v1726
          %vm1763 = vcmp.eq.s32.totalorder %v1715, %v1727
          %vm1764 = vcmp.eq.s32.totalorder %v1716, %v1724
          %vm1765 = vcmp.eq.s32.totalorder %v1716, %v1725
          %vm1766 = vcmp.eq.s32.totalorder %v1716, %v1726
          %vm1767 = vcmp.eq.s32.totalorder %v1716, %v1727
          %vm1768 = vcmp.eq.s32.totalorder %v1717, %v1724
          %vm1769 = vcmp.eq.s32.totalorder %v1717, %v1725
          %vm1770 = vcmp.eq.s32.totalorder %v1717, %v1726
          %vm1771 = vcmp.eq.s32.totalorder %v1717, %v1727
          %vm1772 = vcmp.eq.s32.totalorder %v1718, %v1724
          %vm1773 = vcmp.eq.s32.totalorder %v1718, %v1725
          %vm1774 = vcmp.eq.s32.totalorder %v1718, %v1726
          %vm1775 = vcmp.eq.s32.totalorder %v1718, %v1727
          %vm1776 = vcmp.eq.s32.totalorder %v1719, %v1724
          %vm1777 = vcmp.eq.s32.totalorder %v1719, %v1725
          %vm1778 = vcmp.eq.s32.totalorder %v1719, %v1726
          %vm1779 = vcmp.eq.s32.totalorder %v1719, %v1727
          %vm1780 = vcmp.eq.s32.totalorder %v1720, %v1724
          %vm1781 = vcmp.eq.s32.totalorder %v1720, %v1725
          %vm1782 = vcmp.eq.s32.totalorder %v1720, %v1726
          %vm1783 = vcmp.eq.s32.totalorder %v1720, %v1727
          %vm1784 = vcmp.eq.s32.totalorder %v1721, %v1724
          %vm1785 = vcmp.eq.s32.totalorder %v1721, %v1725
          %vm1786 = vcmp.eq.s32.totalorder %v1721, %v1726
          %vm1787 = vcmp.eq.s32.totalorder %v1721, %v1727
          %vm1788 = vcmp.eq.s32.totalorder %v1722, %v1724
          %vm1789 = vcmp.eq.s32.totalorder %v1722, %v1725
          %vm1790 = vcmp.eq.s32.totalorder %v1722, %v1726
          %vm1791 = vcmp.eq.s32.totalorder %v1722, %v1727
          %v1792 = vsel %vm1728, 1, 0
          %v1793 = vsel %vm1729, 1, 0
          %v1794 = vsel %vm1730, 1, 0
          %v1795 = vsel %vm1731, 1, 0
          %v1796 = vsel %vm1732, 1, 0
          %v1797 = vsel %vm1733, 1, 0
          %v1798 = vsel %vm1734, 1, 0
          %v1799 = vsel %vm1735, 1, 0
          %v1800 = vsel %vm1736, 1, 0
          %v1801 = vsel %vm1737, 1, 0
          %v1802 = vsel %vm1738, 1, 0
          %v1803 = vsel %vm1739, 1, 0
          %v1804 = vsel %vm1740, 1, 0
          %v1805 = vsel %vm1741, 1, 0
          %v1806 = vsel %vm1742, 1, 0
          %v1807 = vsel %vm1743, 1, 0
          %v1808 = vsel %vm1744, 1, 0
          %v1809 = vsel %vm1745, 1, 0
          %v1810 = vsel %vm1746, 1, 0
          %v1811 = vsel %vm1747, 1, 0
          %v1812 = vsel %vm1748, 1, 0
          %v1813 = vsel %vm1749, 1, 0
          %v1814 = vsel %vm1750, 1, 0
          %v1815 = vsel %vm1751, 1, 0
          %v1816 = vsel %vm1752, 1, 0
          %v1817 = vsel %vm1753, 1, 0
          %v1818 = vsel %vm1754, 1, 0
          %v1819 = vsel %vm1755, 1, 0
          %v1820 = vsel %vm1756, 1, 0
          %v1821 = vsel %vm1757, 1, 0
          %v1822 = vsel %vm1758, 1, 0
          %v1823 = vsel %vm1759, 1, 0
          %v1824 = vsel %vm1760, 1, 0
          %v1825 = vsel %vm1761, 1, 0
          %v1826 = vsel %vm1762, 1, 0
          %v1827 = vsel %vm1763, 1, 0
          %v1828 = vsel %vm1764, 1, 0
          %v1829 = vsel %vm1765, 1, 0
          %v1830 = vsel %vm1766, 1, 0
          %v1831 = vsel %vm1767, 1, 0
          %v1832 = vsel %vm1768, 1, 0
          %v1833 = vsel %vm1769, 1, 0
          %v1834 = vsel %vm1770, 1, 0
          %v1835 = vsel %vm1771, 1, 0
          %v1836 = vsel %vm1772, 1, 0
          %v1837 = vsel %vm1773, 1, 0
          %v1838 = vsel %vm1774, 1, 0
          %v1839 = vsel %vm1775, 1, 0
          %v1840 = vsel %vm1776, 1, 0
          %v1841 = vsel %vm1777, 1, 0
          %v1842 = vsel %vm1778, 1, 0
          %v1843 = vsel %vm1779, 1, 0
          %v1844 = vsel %vm1780, 1, 0
          %v1845 = vsel %vm1781, 1, 0
          %v1846 = vsel %vm1782, 1, 0
          %v1847 = vsel %vm1783, 1, 0
          %v1848 = vsel %vm1784, 1, 0
          %v1849 = vsel %vm1785, 1, 0
          %v1850 = vsel %vm1786, 1, 0
          %v1851 = vsel %vm1787, 1, 0
          %v1852 = vsel %vm1788, 1, 0
          %v1853 = vsel %vm1789, 1, 0
          %v1854 = vsel %vm1790, 1, 0
          %v1855 = vsel %vm1791, 1, 0
          %v1856 = vcvt.s32.f32 %v1792
          %v1857 = vcvt.s32.f32 %v1793
          %v1858 = vcvt.s32.f32 %v1794
          %v1859 = vcvt.s32.f32 %v1795
          %v1860 = vcvt.s32.f32 %v1796
          %v1861 = vcvt.s32.f32 %v1797
          %v1862 = vcvt.s32.f32 %v1798
          %v1863 = vcvt.s32.f32 %v1799
          %v1864 = vcvt.s32.f32 %v1800
          %v1865 = vcvt.s32.f32 %v1801
          %v1866 = vcvt.s32.f32 %v1802
          %v1867 = vcvt.s32.f32 %v1803
          %v1868 = vcvt.s32.f32 %v1804
          %v1869 = vcvt.s32.f32 %v1805
          %v1870 = vcvt.s32.f32 %v1806
          %v1871 = vcvt.s32.f32 %v1807
          %v1872 = vcvt.s32.f32 %v1808
          %v1873 = vcvt.s32.f32 %v1809
          %v1874 = vcvt.s32.f32 %v1810
          %v1875 = vcvt.s32.f32 %v1811
          %v1876 = vcvt.s32.f32 %v1812
          %v1877 = vcvt.s32.f32 %v1813
          %v1878 = vcvt.s32.f32 %v1814
          %v1879 = vcvt.s32.f32 %v1815
          %v1880 = vcvt.s32.f32 %v1816
          %v1881 = vcvt.s32.f32 %v1817
          %v1882 = vcvt.s32.f32 %v1818
          %v1883 = vcvt.s32.f32 %v1819
          %v1884 = vcvt.s32.f32 %v1820
          %v1885 = vcvt.s32.f32 %v1821
          %v1886 = vcvt.s32.f32 %v1822
          %v1887 = vcvt.s32.f32 %v1823
          %v1888 = vcvt.s32.f32 %v1824
          %v1889 = vcvt.s32.f32 %v1825
          %v1890 = vcvt.s32.f32 %v1826
          %v1891 = vcvt.s32.f32 %v1827
          %v1892 = vcvt.s32.f32 %v1828
          %v1893 = vcvt.s32.f32 %v1829
          %v1894 = vcvt.s32.f32 %v1830
          %v1895 = vcvt.s32.f32 %v1831
          %v1896 = vcvt.s32.f32 %v1832
          %v1897 = vcvt.s32.f32 %v1833
          %v1898 = vcvt.s32.f32 %v1834
          %v1899 = vcvt.s32.f32 %v1835
          %v1900 = vcvt.s32.f32 %v1836
          %v1901 = vcvt.s32.f32 %v1837
          %v1902 = vcvt.s32.f32 %v1838
          %v1903 = vcvt.s32.f32 %v1839
          %v1904 = vcvt.s32.f32 %v1840
          %v1905 = vcvt.s32.f32 %v1841
          %v1906 = vcvt.s32.f32 %v1842
          %v1907 = vcvt.s32.f32 %v1843
          %v1908 = vcvt.s32.f32 %v1844
          %v1909 = vcvt.s32.f32 %v1845
          %v1910 = vcvt.s32.f32 %v1846
          %v1911 = vcvt.s32.f32 %v1847
          %v1912 = vcvt.s32.f32 %v1848
          %v1913 = vcvt.s32.f32 %v1849
          %v1914 = vcvt.s32.f32 %v1850
          %v1915 = vcvt.s32.f32 %v1851
          %v1916 = vcvt.s32.f32 %v1852
          %v1917 = vcvt.s32.f32 %v1853
          %v1918 = vcvt.s32.f32 %v1854
          %v1919 = vcvt.s32.f32 %v1855
          %v1920 = vpack.c.bf16 %v1860, %v1856
          %v1921 = vpack.c.bf16 %v1861, %v1857
          %v1922 = vpack.c.bf16 %v1862, %v1858
          %v1923 = vpack.c.bf16 %v1863, %v1859
          %v1924 = vpack.c.bf16 %v1868, %v1864
          %v1925 = vpack.c.bf16 %v1869, %v1865
          %v1926 = vpack.c.bf16 %v1870, %v1866
          %v1927 = vpack.c.bf16 %v1871, %v1867
          %v1928 = vpack.c.bf16 %v1876, %v1872
          %v1929 = vpack.c.bf16 %v1877, %v1873
          %v1930 = vpack.c.bf16 %v1878, %v1874
          %v1931 = vpack.c.bf16 %v1879, %v1875
          %v1932 = vpack.c.bf16 %v1884, %v1880
          %v1933 = vpack.c.bf16 %v1885, %v1881
          %v1934 = vpack.c.bf16 %v1886, %v1882
          %v1935 = vpack.c.bf16 %v1887, %v1883
          %v1936 = vpack.c.bf16 %v1892, %v1888
          %v1937 = vpack.c.bf16 %v1893, %v1889
          %v1938 = vpack.c.bf16 %v1894, %v1890
          %v1939 = vpack.c.bf16 %v1895, %v1891
          %v1940 = vpack.c.bf16 %v1900, %v1896
          %v1941 = vpack.c.bf16 %v1901, %v1897
          %v1942 = vpack.c.bf16 %v1902, %v1898
          %v1943 = vpack.c.bf16 %v1903, %v1899
          %v1944 = vpack.c.bf16 %v1908, %v1904
          %v1945 = vpack.c.bf16 %v1909, %v1905
          %v1946 = vpack.c.bf16 %v1910, %v1906
          %v1947 = vpack.c.bf16 %v1911, %v1907
          %v1948 = vpack.c.bf16 %v1916, %v1912
          %v1949 = vpack.c.bf16 %v1917, %v1913
          %v1950 = vpack.c.bf16 %v1918, %v1914
          %v1951 = vpack.c.bf16 %v1919, %v1915
          %v1952 = vld [vmem:[#allocation2] sm:$0xff]
          %v1953 = vld [vmem:[#allocation2 + $0x8] sm:$0xff]
          %v1954 = vld [vmem:[#allocation2 + $0x10] sm:$0xff]
          %v1955 = vld [vmem:[#allocation2 + $0x18] sm:$0xff]
          %v1956 = vld [vmem:[#allocation2 + $0x20] sm:$0xff]
          %v1957 = vld [vmem:[#allocation2 + $0x28] sm:$0xff]
          %v1958 = vld [vmem:[#allocation2 + $0x30] sm:$0xff]
          %v1959 = vld [vmem:[#allocation2 + $0x38] sm:$0xff]
          %v1960 = vld [vmem:[#allocation2 + $0x40] sm:$0xff]
          %v1961 = vld [vmem:[#allocation2 + $0x48] sm:$0xff]
          %v1962 = vld [vmem:[#allocation2 + $0x50] sm:$0xff]
          %v1963 = vld [vmem:[#allocation2 + $0x58] sm:$0xff]
          %v1964 = vld [vmem:[#allocation2 + $0x60] sm:$0xff]
          %v1965 = vld [vmem:[#allocation2 + $0x68] sm:$0xff]
          %v1966 = vld [vmem:[#allocation2 + $0x70] sm:$0xff]
          %v1967 = vld [vmem:[#allocation2 + $0x78] sm:$0xff]
          %v1968 = vpack.c.bf16 %v1625, %v1624
          %v1969 = vpack.c.bf16 %v1627, %v1626
          %v1970 = vpack.c.bf16 %v1629, %v1628
          %v1971 = vpack.c.bf16 %v1631, %v1630
          %v1972 = vpack.c.bf16 %v1633, %v1632
          %v1973 = vpack.c.bf16 %v1635, %v1634
          %v1974 = vpack.c.bf16 %v1637, %v1636
          %v1975 = vpack.c.bf16 %v1639, %v1638
          %v1976 = vpack.c.bf16 %v1641, %v1640
          %v1977 = vpack.c.bf16 %v1643, %v1642
          %v1978 = vpack.c.bf16 %v1645, %v1644
          %v1979 = vpack.c.bf16 %v1647, %v1646
          %v1980 = vpack.c.bf16 %v1649, %v1648
          %v1981 = vpack.c.bf16 %v1651, %v1650
          %v1982 = vpack.c.bf16 %v1653, %v1652
          %v1983 = vpack.c.bf16 %v1655, %v1654
          %v1984 = vpack.c.bf16 %v1657, %v1656
          %v1985 = vpack.c.bf16 %v1659, %v1658
          %v1986 = vpack.c.bf16 %v1661, %v1660
          %v1987 = vpack.c.bf16 %v1663, %v1662
          %v1988 = vpack.c.bf16 %v1665, %v1664
          %v1989 = vpack.c.bf16 %v1667, %v1666
          %v1990 = vpack.c.bf16 %v1669, %v1668
          %v1991 = vpack.c.bf16 %v1671, %v1670
          %v1992 = vpack.c.bf16 %v1673, %v1672
          %v1993 = vpack.c.bf16 %v1675, %v1674
          %v1994 = vpack.c.bf16 %v1677, %v1676
          %v1995 = vpack.c.bf16 %v1679, %v1678
          %v1996 = vpack.c.bf16 %v1681, %v1680
          %v1997 = vpack.c.bf16 %v1683, %v1682
          %v1998 = vpack.c.bf16 %v1685, %v1684
          %v1999 = vpack.c.bf16 %v1687, %v1686
          %2000 = vmatpush.bf16.msra.mxu0 %v1975
          %2001 = vmatpush.bf16.msra.mxu0 %v1974
          %2002 = vmatpush.bf16.msra.mxu0 %v1973
          %2003 = vmatpush.bf16.msra.mxu0 %v1972
          %2004 = vmatpush.bf16.msra.mxu0 %v1971
          %2005 = vmatpush.bf16.msra.mxu0 %v1970
          %2006 = vmatpush.bf16.msra.mxu0 %v1969
          %2007 = vmatpush.bf16.msra.mxu0 %v1968
          %2008 = vmatmul.bf16.gmra.mxu0 %v1920
          %v2009 = vpop.f32.mrf.mxu0
          %v2010 = vadd.f32 0.0, %v2009
          %v2011 = vpop.f32.mrf.mxu0
          %v2012 = vadd.f32 0.0, %v2011
          %2013 = vmatmul.bf16.gmra.mxu0 %v1924
          %v2014 = vpop.f32.mrf.mxu0
          %v2015 = vadd.f32 0.0, %v2014
          %v2016 = vpop.f32.mrf.mxu0
          %v2017 = vadd.f32 0.0, %v2016
          %2018 = vmatmul.bf16.gmra.mxu0 %v1928
          %v2019 = vpop.f32.mrf.mxu0
          %v2020 = vadd.f32 0.0, %v2019
          %v2021 = vpop.f32.mrf.mxu0
          %v2022 = vadd.f32 0.0, %v2021
          %2023 = vmatmul.bf16.gmra.mxu0 %v1932
          %v2024 = vpop.f32.mrf.mxu0
          %v2025 = vadd.f32 0.0, %v2024
          %v2026 = vpop.f32.mrf.mxu0
          %v2027 = vadd.f32 0.0, %v2026
          %2028 = vmatmul.bf16.gmra.mxu0 %v1936
          %v2029 = vpop.f32.mrf.mxu0
          %v2030 = vadd.f32 0.0, %v2029
          %v2031 = vpop.f32.mrf.mxu0
          %v2032 = vadd.f32 0.0, %v2031
          %2033 = vmatmul.bf16.gmra.mxu0 %v1940
          %v2034 = vpop.f32.mrf.mxu0
          %v2035 = vadd.f32 0.0, %v2034
          %v2036 = vpop.f32.mrf.mxu0
          %v2037 = vadd.f32 0.0, %v2036
          %2038 = vmatmul.bf16.gmra.mxu0 %v1944
          %v2039 = vpop.f32.mrf.mxu0
          %v2040 = vadd.f32 0.0, %v2039
          %v2041 = vpop.f32.mrf.mxu0
          %v2042 = vadd.f32 0.0, %v2041
          %2043 = vmatmul.bf16.gmra.mxu0 %v1948
          %v2044 = vpop.f32.mrf.mxu0
          %v2045 = vadd.f32 0.0, %v2044
          %v2046 = vpop.f32.mrf.mxu0
          %v2047 = vadd.f32 0.0, %v2046
          %2048 = vdwg.mxu0
          %2049 = vmatpush.bf16.msra.mxu0 %v1983
          %2050 = vmatpush.bf16.msra.mxu0 %v1982
          %2051 = vmatpush.bf16.msra.mxu0 %v1981
          %2052 = vmatpush.bf16.msra.mxu0 %v1980
          %2053 = vmatpush.bf16.msra.mxu0 %v1979
          %2054 = vmatpush.bf16.msra.mxu0 %v1978
          %2055 = vmatpush.bf16.msra.mxu0 %v1977
          %2056 = vmatpush.bf16.msra.mxu0 %v1976
          %2057 = vmatmul.bf16.gmra.mxu0 %v1921
          %v2058 = vpop.f32.mrf.mxu0
          %v2059 = vadd.f32 %v2010, %v2058
          %v2060 = vpop.f32.mrf.mxu0
          %v2061 = vadd.f32 %v2012, %v2060
          %2062 = vmatmul.bf16.gmra.mxu0 %v1925
          %v2063 = vpop.f32.mrf.mxu0
          %v2064 = vadd.f32 %v2015, %v2063
          %v2065 = vpop.f32.mrf.mxu0
          %v2066 = vadd.f32 %v2017, %v2065
          %2067 = vmatmul.bf16.gmra.mxu0 %v1929
          %v2068 = vpop.f32.mrf.mxu0
          %v2069 = vadd.f32 %v2020, %v2068
          %v2070 = vpop.f32.mrf.mxu0
          %v2071 = vadd.f32 %v2022, %v2070
          %2072 = vmatmul.bf16.gmra.mxu0 %v1933
          %v2073 = vpop.f32.mrf.mxu0
          %v2074 = vadd.f32 %v2025, %v2073
          %v2075 = vpop.f32.mrf.mxu0
          %v2076 = vadd.f32 %v2027, %v2075
          %2077 = vmatmul.bf16.gmra.mxu0 %v1937
          %v2078 = vpop.f32.mrf.mxu0
          %v2079 = vadd.f32 %v2030, %v2078
          %v2080 = vpop.f32.mrf.mxu0
          %v2081 = vadd.f32 %v2032, %v2080
          %2082 = vmatmul.bf16.gmra.mxu0 %v1941
          %v2083 = vpop.f32.mrf.mxu0
          %v2084 = vadd.f32 %v2035, %v2083
          %v2085 = vpop.f32.mrf.mxu0
          %v2086 = vadd.f32 %v2037, %v2085
          %2087 = vmatmul.bf16.gmra.mxu0 %v1945
          %v2088 = vpop.f32.mrf.mxu0
          %v2089 = vadd.f32 %v2040, %v2088
          %v2090 = vpop.f32.mrf.mxu0
          %v2091 = vadd.f32 %v2042, %v2090
          %2092 = vmatmul.bf16.gmra.mxu0 %v1949
          %v2093 = vpop.f32.mrf.mxu0
          %v2094 = vadd.f32 %v2045, %v2093
          %v2095 = vpop.f32.mrf.mxu0
          %v2096 = vadd.f32 %v2047, %v2095
          %2097 = vdwg.mxu0
          %2098 = vmatpush.bf16.msra.mxu0 %v1991
          %2099 = vmatpush.bf16.msra.mxu0 %v1990
          %2100 = vmatpush.bf16.msra.mxu0 %v1989
          %2101 = vmatpush.bf16.msra.mxu0 %v1988
          %2102 = vmatpush.bf16.msra.mxu0 %v1987
          %2103 = vmatpush.bf16.msra.mxu0 %v1986
          %2104 = vmatpush.bf16.msra.mxu0 %v1985
          %2105 = vmatpush.bf16.msra.mxu0 %v1984
          %2106 = vmatmul.bf16.gmra.mxu0 %v1922
          %v2107 = vpop.f32.mrf.mxu0
          %v2108 = vadd.f32 %v2059, %v2107
          %v2109 = vpop.f32.mrf.mxu0
          %v2110 = vadd.f32 %v2061, %v2109
          %2111 = vmatmul.bf16.gmra.mxu0 %v1926
          %v2112 = vpop.f32.mrf.mxu0
          %v2113 = vadd.f32 %v2064, %v2112
          %v2114 = vpop.f32.mrf.mxu0
          %v2115 = vadd.f32 %v2066, %v2114
          %2116 = vmatmul.bf16.gmra.mxu0 %v1930
          %v2117 = vpop.f32.mrf.mxu0
          %v2118 = vadd.f32 %v2069, %v2117
          %v2119 = vpop.f32.mrf.mxu0
          %v2120 = vadd.f32 %v2071, %v2119
          %2121 = vmatmul.bf16.gmra.mxu0 %v1934
          %v2122 = vpop.f32.mrf.mxu0
          %v2123 = vadd.f32 %v2074, %v2122
          %v2124 = vpop.f32.mrf.mxu0
          %v2125 = vadd.f32 %v2076, %v2124
          %2126 = vmatmul.bf16.gmra.mxu0 %v1938
          %v2127 = vpop.f32.mrf.mxu0
          %v2128 = vadd.f32 %v2079, %v2127
          %v2129 = vpop.f32.mrf.mxu0
          %v2130 = vadd.f32 %v2081, %v2129
          %2131 = vmatmul.bf16.gmra.mxu0 %v1942
          %v2132 = vpop.f32.mrf.mxu0
          %v2133 = vadd.f32 %v2084, %v2132
          %v2134 = vpop.f32.mrf.mxu0
          %v2135 = vadd.f32 %v2086, %v2134
          %2136 = vmatmul.bf16.gmra.mxu0 %v1946
          %v2137 = vpop.f32.mrf.mxu0
          %v2138 = vadd.f32 %v2089, %v2137
          %v2139 = vpop.f32.mrf.mxu0
          %v2140 = vadd.f32 %v2091, %v2139
          %2141 = vmatmul.bf16.gmra.mxu0 %v1950
          %v2142 = vpop.f32.mrf.mxu0
          %v2143 = vadd.f32 %v2094, %v2142
          %v2144 = vpop.f32.mrf.mxu0
          %v2145 = vadd.f32 %v2096, %v2144
          %2146 = vdwg.mxu0
          %2147 = vmatpush.bf16.msra.mxu0 %v1999
          %2148 = vmatpush.bf16.msra.mxu0 %v1998
          %2149 = vmatpush.bf16.msra.mxu0 %v1997
          %2150 = vmatpush.bf16.msra.mxu0 %v1996
          %2151 = vmatpush.bf16.msra.mxu0 %v1995
          %2152 = vmatpush.bf16.msra.mxu0 %v1994
          %2153 = vmatpush.bf16.msra.mxu0 %v1993
          %2154 = vmatpush.bf16.msra.mxu0 %v1992
          %2155 = vmatmul.bf16.gmra.mxu0 %v1923
          %v2156 = vpop.f32.mrf.mxu0
          %v2157 = vadd.f32 %v2108, %v2156
          %v2158 = vpop.f32.mrf.mxu0
          %v2159 = vadd.f32 %v2110, %v2158
          %2160 = vmatmul.bf16.gmra.mxu0 %v1927
          %v2161 = vpop.f32.mrf.mxu0
          %v2162 = vadd.f32 %v2113, %v2161
          %v2163 = vpop.f32.mrf.mxu0
          %v2164 = vadd.f32 %v2115, %v2163
          %2165 = vmatmul.bf16.gmra.mxu0 %v1931
          %v2166 = vpop.f32.mrf.mxu0
          %v2167 = vadd.f32 %v2118, %v2166
          %v2168 = vpop.f32.mrf.mxu0
          %v2169 = vadd.f32 %v2120, %v2168
          %2170 = vmatmul.bf16.gmra.mxu0 %v1935
          %v2171 = vpop.f32.mrf.mxu0
          %v2172 = vadd.f32 %v2123, %v2171
          %v2173 = vpop.f32.mrf.mxu0
          %v2174 = vadd.f32 %v2125, %v2173
          %2175 = vmatmul.bf16.gmra.mxu0 %v1939
          %v2176 = vpop.f32.mrf.mxu0
          %v2177 = vadd.f32 %v2128, %v2176
          %v2178 = vpop.f32.mrf.mxu0
          %v2179 = vadd.f32 %v2130, %v2178
          %2180 = vmatmul.bf16.gmra.mxu0 %v1943
          %v2181 = vpop.f32.mrf.mxu0
          %v2182 = vadd.f32 %v2133, %v2181
          %v2183 = vpop.f32.mrf.mxu0
          %v2184 = vadd.f32 %v2135, %v2183
          %2185 = vmatmul.bf16.gmra.mxu0 %v1947
          %v2186 = vpop.f32.mrf.mxu0
          %v2187 = vadd.f32 %v2138, %v2186
          %v2188 = vpop.f32.mrf.mxu0
          %v2189 = vadd.f32 %v2140, %v2188
          %2190 = vmatmul.bf16.gmra.mxu0 %v1951
          %v2191 = vpop.f32.mrf.mxu0
          %v2192 = vadd.f32 %v2143, %v2191
          %v2193 = vpop.f32.mrf.mxu0
          %v2194 = vadd.f32 %v2145, %v2193
          %2195 = vdwg.mxu0
          %v2196 = vadd.f32 %v1952, %v2157
          %v2197 = vadd.f32 %v1953, %v2159
          %v2198 = vadd.f32 %v1954, %v2162
          %v2199 = vadd.f32 %v1955, %v2164
          %v2200 = vadd.f32 %v1956, %v2167
          %v2201 = vadd.f32 %v1957, %v2169
          %v2202 = vadd.f32 %v1958, %v2172
          %v2203 = vadd.f32 %v1959, %v2174
          %v2204 = vadd.f32 %v1960, %v2177
          %v2205 = vadd.f32 %v1961, %v2179
          %v2206 = vadd.f32 %v1962, %v2182
          %v2207 = vadd.f32 %v1963, %v2184
          %v2208 = vadd.f32 %v1964, %v2187
          %v2209 = vadd.f32 %v1965, %v2189
          %v2210 = vadd.f32 %v1966, %v2192
          %v2211 = vadd.f32 %v1967, %v2194
          %2212 = vst [vmem:[#allocation2] sm:$0xff] %v2196
          %2213 = vst [vmem:[#allocation2 + $0x8] sm:$0xff] %v2197
          %2214 = vst [vmem:[#allocation2 + $0x10] sm:$0xff] %v2198
          %2215 = vst [vmem:[#allocation2 + $0x18] sm:$0xff] %v2199
          %2216 = vst [vmem:[#allocation2 + $0x20] sm:$0xff] %v2200
          %2217 = vst [vmem:[#allocation2 + $0x28] sm:$0xff] %v2201
          %2218 = vst [vmem:[#allocation2 + $0x30] sm:$0xff] %v2202
          %2219 = vst [vmem:[#allocation2 + $0x38] sm:$0xff] %v2203
          %2220 = vst [vmem:[#allocation2 + $0x40] sm:$0xff] %v2204
          %2221 = vst [vmem:[#allocation2 + $0x48] sm:$0xff] %v2205
          %2222 = vst [vmem:[#allocation2 + $0x50] sm:$0xff] %v2206
          %2223 = vst [vmem:[#allocation2 + $0x58] sm:$0xff] %v2207
          %2224 = vst [vmem:[#allocation2 + $0x60] sm:$0xff] %v2208
          %2225 = vst [vmem:[#allocation2 + $0x68] sm:$0xff] %v2209
          %2226 = vst [vmem:[#allocation2 + $0x70] sm:$0xff] %v2210
          %2227 = vst [vmem:[#allocation2 + $0x78] sm:$0xff] %v2211
        $region56: #{tpu_custom_call.1} parent=47 // pred_fallthru
          _
        %p2228 = scmp.eq.s32.totalorder %s41, 1
        // Predicated region
        $region57: #{tpu_custom_call.1} parent=47 // pred_check
          %p2229 = pneg %p2228
        $region58: #{tpu_custom_call.1} parent=47 // pred_check_branch
          %2231 = sbr.rel (%p2229) target = $region60
        $region59: #{tpu_custom_call.1} parent=47 // pred_region
          %v2232 = vld [vmem:[#allocation2] sm:$0xff]
          %v2233 = vld [vmem:[#allocation2 + $0x8] sm:$0xff]
          %v2234 = vld [vmem:[#allocation2 + $0x10] sm:$0xff]
          %v2235 = vld [vmem:[#allocation2 + $0x18] sm:$0xff]
          %v2236 = vld [vmem:[#allocation2 + $0x20] sm:$0xff]
          %v2237 = vld [vmem:[#allocation2 + $0x28] sm:$0xff]
          %v2238 = vld [vmem:[#allocation2 + $0x30] sm:$0xff]
          %v2239 = vld [vmem:[#allocation2 + $0x38] sm:$0xff]
          %v2240 = vld [vmem:[#allocation2 + $0x40] sm:$0xff]
          %v2241 = vld [vmem:[#allocation2 + $0x48] sm:$0xff]
          %v2242 = vld [vmem:[#allocation2 + $0x50] sm:$0xff]
          %v2243 = vld [vmem:[#allocation2 + $0x58] sm:$0xff]
          %v2244 = vld [vmem:[#allocation2 + $0x60] sm:$0xff]
          %v2245 = vld [vmem:[#allocation2 + $0x68] sm:$0xff]
          %v2246 = vld [vmem:[#allocation2 + $0x70] sm:$0xff]
          %v2247 = vld [vmem:[#allocation2 + $0x78] sm:$0xff]
          %vm2248 = vcmp.gt.f32.partialorder %v2232, 0.0
          %vm2249 = vcmp.gt.f32.partialorder %v2233, 0.0
          %vm2250 = vcmp.gt.f32.partialorder %v2234, 0.0
          %vm2251 = vcmp.gt.f32.partialorder %v2235, 0.0
          %vm2252 = vcmp.gt.f32.partialorder %v2236, 0.0
          %vm2253 = vcmp.gt.f32.partialorder %v2237, 0.0
          %vm2254 = vcmp.gt.f32.partialorder %v2238, 0.0
          %vm2255 = vcmp.gt.f32.partialorder %v2239, 0.0
          %vm2256 = vcmp.gt.f32.partialorder %v2240, 0.0
          %vm2257 = vcmp.gt.f32.partialorder %v2241, 0.0
          %vm2258 = vcmp.gt.f32.partialorder %v2242, 0.0
          %vm2259 = vcmp.gt.f32.partialorder %v2243, 0.0
          %vm2260 = vcmp.gt.f32.partialorder %v2244, 0.0
          %vm2261 = vcmp.gt.f32.partialorder %v2245, 0.0
          %vm2262 = vcmp.gt.f32.partialorder %v2246, 0.0
          %vm2263 = vcmp.gt.f32.partialorder %v2247, 0.0
          %v2264 = vmul.f32 %v2232, 0.2
          %v2265 = vmul.f32 %v2233, 0.2
          %v2266 = vmul.f32 %v2234, 0.2
          %v2267 = vmul.f32 %v2235, 0.2
          %v2268 = vmul.f32 %v2236, 0.2
          %v2269 = vmul.f32 %v2237, 0.2
          %v2270 = vmul.f32 %v2238, 0.2
          %v2271 = vmul.f32 %v2239, 0.2
          %v2272 = vmul.f32 %v2240, 0.2
          %v2273 = vmul.f32 %v2241, 0.2
          %v2274 = vmul.f32 %v2242, 0.2
          %v2275 = vmul.f32 %v2243, 0.2
          %v2276 = vmul.f32 %v2244, 0.2
          %v2277 = vmul.f32 %v2245, 0.2
          %v2278 = vmul.f32 %v2246, 0.2
          %v2279 = vmul.f32 %v2247, 0.2
          %v2280 = vsel %vm2248, %v2232, %v2264
          %v2281 = vsel %vm2249, %v2233, %v2265
          %v2282 = vsel %vm2250, %v2234, %v2266
          %v2283 = vsel %vm2251, %v2235, %v2267
          %v2284 = vsel %vm2252, %v2236, %v2268
          %v2285 = vsel %vm2253, %v2237, %v2269
          %v2286 = vsel %vm2254, %v2238, %v2270
          %v2287 = vsel %vm2255, %v2239, %v2271
          %v2288 = vsel %vm2256, %v2240, %v2272
          %v2289 = vsel %vm2257, %v2241, %v2273
          %v2290 = vsel %vm2258, %v2242, %v2274
          %v2291 = vsel %vm2259, %v2243, %v2275
          %v2292 = vsel %vm2260, %v2244, %v2276
          %v2293 = vsel %vm2261, %v2245, %v2277
          %v2294 = vsel %vm2262, %v2246, %v2278
          %v2295 = vsel %vm2263, %v2247, %v2279
          %v2296 = vmul.f32 %v2280, %v2280
          %v2297 = vmul.f32 %v2281, %v2281
          %v2298 = vmul.f32 %v2282, %v2282
          %v2299 = vmul.f32 %v2283, %v2283
          %v2300 = vmul.f32 %v2284, %v2284
          %v2301 = vmul.f32 %v2285, %v2285
          %v2302 = vmul.f32 %v2286, %v2286
          %v2303 = vmul.f32 %v2287, %v2287
          %v2304 = vmul.f32 %v2288, %v2288
          %v2305 = vmul.f32 %v2289, %v2289
          %v2306 = vmul.f32 %v2290, %v2290
          %v2307 = vmul.f32 %v2291, %v2291
          %v2308 = vmul.f32 %v2292, %v2292
          %v2309 = vmul.f32 %v2293, %v2293
          %v2310 = vmul.f32 %v2294, %v2294
          %v2311 = vmul.f32 %v2295, %v2295
          %2312 = vadd.xlane.f32.xlu0 %v2296
          %v2313 = vpop.xlane.xlu0 %2312
          %2314 = vadd.xlane.f32.xlu0 %v2297
          %v2315 = vpop.xlane.xlu0 %2314
          %2316 = vadd.xlane.f32.xlu0 %v2298
          %v2317 = vpop.xlane.xlu0 %2316
          %2318 = vadd.xlane.f32.xlu0 %v2299
          %v2319 = vpop.xlane.xlu0 %2318
          %2320 = vadd.xlane.f32.xlu0 %v2300
          %v2321 = vpop.xlane.xlu0 %2320
          %2322 = vadd.xlane.f32.xlu0 %v2301
          %v2323 = vpop.xlane.xlu0 %2322
          %2324 = vadd.xlane.f32.xlu0 %v2302
          %v2325 = vpop.xlane.xlu0 %2324
          %2326 = vadd.xlane.f32.xlu0 %v2303
          %v2327 = vpop.xlane.xlu0 %2326
          %2328 = vadd.xlane.f32.xlu0 %v2304
          %v2329 = vpop.xlane.xlu0 %2328
          %2330 = vadd.xlane.f32.xlu0 %v2305
          %v2331 = vpop.xlane.xlu0 %2330
          %2332 = vadd.xlane.f32.xlu0 %v2306
          %v2333 = vpop.xlane.xlu0 %2332
          %2334 = vadd.xlane.f32.xlu0 %v2307
          %v2335 = vpop.xlane.xlu0 %2334
          %2336 = vadd.xlane.f32.xlu0 %v2308
          %v2337 = vpop.xlane.xlu0 %2336
          %2338 = vadd.xlane.f32.xlu0 %v2309
          %v2339 = vpop.xlane.xlu0 %2338
          %2340 = vadd.xlane.f32.xlu0 %v2310
          %v2341 = vpop.xlane.xlu0 %2340
          %2342 = vadd.xlane.f32.xlu0 %v2311
          %v2343 = vpop.xlane.xlu0 %2342
          %v2344 = vmax.f32 %v2313, 1e-24
          %v2345 = vmax.f32 %v2315, 1e-24
          %v2346 = vmax.f32 %v2317, 1e-24
          %v2347 = vmax.f32 %v2319, 1e-24
          %v2348 = vmax.f32 %v2321, 1e-24
          %v2349 = vmax.f32 %v2323, 1e-24
          %v2350 = vmax.f32 %v2325, 1e-24
          %v2351 = vmax.f32 %v2327, 1e-24
          %v2352 = vmax.f32 %v2329, 1e-24
          %v2353 = vmax.f32 %v2331, 1e-24
          %v2354 = vmax.f32 %v2333, 1e-24
          %v2355 = vmax.f32 %v2335, 1e-24
          %v2356 = vmax.f32 %v2337, 1e-24
          %v2357 = vmax.f32 %v2339, 1e-24
          %v2358 = vmax.f32 %v2341, 1e-24
          %v2359 = vmax.f32 %v2343, 1e-24
          %v2360 = vrsqrt.pop %v2344
          %v2361 = vmul.f32 %v2360, %v2344
          %v2362 = vmul.f32 %v2361, %v2360
          %v2363 = vmul.f32 0.5, %v2362
          %v2364 = vsub.f32 1.5, %v2363
          %v2365 = vmul.f32 %v2360, %v2364
          %vm2366 = vweird.f32 %v2344
          %vm2367 = vweird.f32 %v2360
          %vm2368 = vmor %vm2366, %vm2367
          %v2369 = vsel %vm2368, %v2360, %v2365
          %v2370 = vrsqrt.pop %v2345
          %v2371 = vmul.f32 %v2370, %v2345
          %v2372 = vmul.f32 %v2371, %v2370
          %v2373 = vmul.f32 0.5, %v2372
          %v2374 = vsub.f32 1.5, %v2373
          %v2375 = vmul.f32 %v2370, %v2374
          %vm2376 = vweird.f32 %v2345
          %vm2377 = vweird.f32 %v2370
          %vm2378 = vmor %vm2376, %vm2377
          %v2379 = vsel %vm2378, %v2370, %v2375
          %v2380 = vrsqrt.pop %v2346
          %v2381 = vmul.f32 %v2380, %v2346
          %v2382 = vmul.f32 %v2381, %v2380
          %v2383 = vmul.f32 0.5, %v2382
          %v2384 = vsub.f32 1.5, %v2383
          %v2385 = vmul.f32 %v2380, %v2384
          %vm2386 = vweird.f32 %v2346
          %vm2387 = vweird.f32 %v2380
          %vm2388 = vmor %vm2386, %vm2387
          %v2389 = vsel %vm2388, %v2380, %v2385
          %v2390 = vrsqrt.pop %v2347
          %v2391 = vmul.f32 %v2390, %v2347
          %v2392 = vmul.f32 %v2391, %v2390
          %v2393 = vmul.f32 0.5, %v2392
          %v2394 = vsub.f32 1.5, %v2393
          %v2395 = vmul.f32 %v2390, %v2394
          %vm2396 = vweird.f32 %v2347
          %vm2397 = vweird.f32 %v2390
          %vm2398 = vmor %vm2396, %vm2397
          %v2399 = vsel %vm2398, %v2390, %v2395
          %v2400 = vrsqrt.pop %v2348
          %v2401 = vmul.f32 %v2400, %v2348
          %v2402 = vmul.f32 %v2401, %v2400
          %v2403 = vmul.f32 0.5, %v2402
          %v2404 = vsub.f32 1.5, %v2403
          %v2405 = vmul.f32 %v2400, %v2404
          %vm2406 = vweird.f32 %v2348
          %vm2407 = vweird.f32 %v2400
          %vm2408 = vmor %vm2406, %vm2407
          %v2409 = vsel %vm2408, %v2400, %v2405
          %v2410 = vrsqrt.pop %v2349
          %v2411 = vmul.f32 %v2410, %v2349
          %v2412 = vmul.f32 %v2411, %v2410
          %v2413 = vmul.f32 0.5, %v2412
          %v2414 = vsub.f32 1.5, %v2413
          %v2415 = vmul.f32 %v2410, %v2414
          %vm2416 = vweird.f32 %v2349
          %vm2417 = vweird.f32 %v2410
          %vm2418 = vmor %vm2416, %vm2417
          %v2419 = vsel %vm2418, %v2410, %v2415
          %v2420 = vrsqrt.pop %v2350
          %v2421 = vmul.f32 %v2420, %v2350
          %v2422 = vmul.f32 %v2421, %v2420
          %v2423 = vmul.f32 0.5, %v2422
          %v2424 = vsub.f32 1.5, %v2423
          %v2425 = vmul.f32 %v2420, %v2424
          %vm2426 = vweird.f32 %v2350
          %vm2427 = vweird.f32 %v2420
          %vm2428 = vmor %vm2426, %vm2427
          %v2429 = vsel %vm2428, %v2420, %v2425
          %v2430 = vrsqrt.pop %v2351
          %v2431 = vmul.f32 %v2430, %v2351
          %v2432 = vmul.f32 %v2431, %v2430
          %v2433 = vmul.f32 0.5, %v2432
          %v2434 = vsub.f32 1.5, %v2433
          %v2435 = vmul.f32 %v2430, %v2434
          %vm2436 = vweird.f32 %v2351
          %vm2437 = vweird.f32 %v2430
          %vm2438 = vmor %vm2436, %vm2437
          %v2439 = vsel %vm2438, %v2430, %v2435
          %v2440 = vrsqrt.pop %v2352
          %v2441 = vmul.f32 %v2440, %v2352
          %v2442 = vmul.f32 %v2441, %v2440
          %v2443 = vmul.f32 0.5, %v2442
          %v2444 = vsub.f32 1.5, %v2443
          %v2445 = vmul.f32 %v2440, %v2444
          %vm2446 = vweird.f32 %v2352
          %vm2447 = vweird.f32 %v2440
          %vm2448 = vmor %vm2446, %vm2447
          %v2449 = vsel %vm2448, %v2440, %v2445
          %v2450 = vrsqrt.pop %v2353
          %v2451 = vmul.f32 %v2450, %v2353
          %v2452 = vmul.f32 %v2451, %v2450
          %v2453 = vmul.f32 0.5, %v2452
          %v2454 = vsub.f32 1.5, %v2453
          %v2455 = vmul.f32 %v2450, %v2454
          %vm2456 = vweird.f32 %v2353
          %vm2457 = vweird.f32 %v2450
          %vm2458 = vmor %vm2456, %vm2457
          %v2459 = vsel %vm2458, %v2450, %v2455
          %v2460 = vrsqrt.pop %v2354
          %v2461 = vmul.f32 %v2460, %v2354
          %v2462 = vmul.f32 %v2461, %v2460
          %v2463 = vmul.f32 0.5, %v2462
          %v2464 = vsub.f32 1.5, %v2463
          %v2465 = vmul.f32 %v2460, %v2464
          %vm2466 = vweird.f32 %v2354
          %vm2467 = vweird.f32 %v2460
          %vm2468 = vmor %vm2466, %vm2467
          %v2469 = vsel %vm2468, %v2460, %v2465
          %v2470 = vrsqrt.pop %v2355
          %v2471 = vmul.f32 %v2470, %v2355
          %v2472 = vmul.f32 %v2471, %v2470
          %v2473 = vmul.f32 0.5, %v2472
          %v2474 = vsub.f32 1.5, %v2473
          %v2475 = vmul.f32 %v2470, %v2474
          %vm2476 = vweird.f32 %v2355
          %vm2477 = vweird.f32 %v2470
          %vm2478 = vmor %vm2476, %vm2477
          %v2479 = vsel %vm2478, %v2470, %v2475
          %v2480 = vrsqrt.pop %v2356
          %v2481 = vmul.f32 %v2480, %v2356
          %v2482 = vmul.f32 %v2481, %v2480
          %v2483 = vmul.f32 0.5, %v2482
          %v2484 = vsub.f32 1.5, %v2483
          %v2485 = vmul.f32 %v2480, %v2484
          %vm2486 = vweird.f32 %v2356
          %vm2487 = vweird.f32 %v2480
          %vm2488 = vmor %vm2486, %vm2487
          %v2489 = vsel %vm2488, %v2480, %v2485
          %v2490 = vrsqrt.pop %v2357
          %v2491 = vmul.f32 %v2490, %v2357
          %v2492 = vmul.f32 %v2491, %v2490
          %v2493 = vmul.f32 0.5, %v2492
          %v2494 = vsub.f32 1.5, %v2493
          %v2495 = vmul.f32 %v2490, %v2494
          %vm2496 = vweird.f32 %v2357
          %vm2497 = vweird.f32 %v2490
          %vm2498 = vmor %vm2496, %vm2497
          %v2499 = vsel %vm2498, %v2490, %v2495
          %v2500 = vrsqrt.pop %v2358
          %v2501 = vmul.f32 %v2500, %v2358
          %v2502 = vmul.f32 %v2501, %v2500
          %v2503 = vmul.f32 0.5, %v2502
          %v2504 = vsub.f32 1.5, %v2503
          %v2505 = vmul.f32 %v2500, %v2504
          %vm2506 = vweird.f32 %v2358
          %vm2507 = vweird.f32 %v2500
          %vm2508 = vmor %vm2506, %vm2507
          %v2509 = vsel %vm2508, %v2500, %v2505
          %v2510 = vrsqrt.pop %v2359
          %v2511 = vmul.f32 %v2510, %v2359
          %v2512 = vmul.f32 %v2511, %v2510
          %v2513 = vmul.f32 0.5, %v2512
          %v2514 = vsub.f32 1.5, %v2513
          %v2515 = vmul.f32 %v2510, %v2514
          %vm2516 = vweird.f32 %v2359
          %vm2517 = vweird.f32 %v2510
          %vm2518 = vmor %vm2516, %vm2517
          %v2519 = vsel %vm2518, %v2510, %v2515
          %v2520 = vmul.f32 %v2280, %v2369
          %v2521 = vmul.f32 %v2281, %v2379
          %v2522 = vmul.f32 %v2282, %v2389
          %v2523 = vmul.f32 %v2283, %v2399
          %v2524 = vmul.f32 %v2284, %v2409
          %v2525 = vmul.f32 %v2285, %v2419
          %v2526 = vmul.f32 %v2286, %v2429
          %v2527 = vmul.f32 %v2287, %v2439
          %v2528 = vmul.f32 %v2288, %v2449
          %v2529 = vmul.f32 %v2289, %v2459
          %v2530 = vmul.f32 %v2290, %v2469
          %v2531 = vmul.f32 %v2291, %v2479
          %v2532 = vmul.f32 %v2292, %v2489
          %v2533 = vmul.f32 %v2293, %v2499
          %v2534 = vmul.f32 %v2294, %v2509
          %v2535 = vmul.f32 %v2295, %v2519
          %2536 = vst [vmem:[%s465] sm:$0xff] %v2520
          %2537 = vst [vmem:[%s465 + $0x8] sm:$0xff] %v2521
          %2538 = vst [vmem:[%s465 + $0x10] sm:$0xff] %v2522
          %2539 = vst [vmem:[%s465 + $0x18] sm:$0xff] %v2523
          %2540 = vst [vmem:[%s465 + $0x20] sm:$0xff] %v2524
          %2541 = vst [vmem:[%s465 + $0x28] sm:$0xff] %v2525
          %2542 = vst [vmem:[%s465 + $0x30] sm:$0xff] %v2526
          %2543 = vst [vmem:[%s465 + $0x38] sm:$0xff] %v2527
          %2544 = vst [vmem:[%s465 + $0x40] sm:$0xff] %v2528
          %2545 = vst [vmem:[%s465 + $0x48] sm:$0xff] %v2529
          %2546 = vst [vmem:[%s465 + $0x50] sm:$0xff] %v2530
          %2547 = vst [vmem:[%s465 + $0x58] sm:$0xff] %v2531
          %2548 = vst [vmem:[%s465 + $0x60] sm:$0xff] %v2532
          %2549 = vst [vmem:[%s465 + $0x68] sm:$0xff] %v2533
          %2550 = vst [vmem:[%s465 + $0x70] sm:$0xff] %v2534
          %2551 = vst [vmem:[%s465 + $0x78] sm:$0xff] %v2535
        $region60: #{tpu_custom_call.1} parent=47 // pred_fallthru
          _
        %s2552 = sand.u32 %s271, 1
        %s2553 = scalar_lea.sflag [#allocation7], %s2552
        %s2554 = sand.u32 %s271, 1
        %s2555 = smul.addr %s2554, 128
        %s2556 = scalar_lea.vmem [#allocation6], %s2555
        // Predicated region
        $region61: #{tpu_custom_call.1} parent=47 // pred_check
          %p2557 = pneg %p281
        $region62: #{tpu_custom_call.1} parent=47 // pred_check_branch
          %2559 = sbr.rel (%p2557) target = $region64
        $region63: #{tpu_custom_call.1} parent=47 // pred_region
          %s2560 = smul.u32 16, %s40
          %2562 = vsyncadd %s2553, 0
          %s2563 = smul.addr %s2560, 8
          %s2564 = scalar_lea.hbm %s9, %s2563
          %s2565 = sshll.u32 %s2556, 4
          %s2566 = int_to_ptr.vmem [resolvable:$true] %s2565
          %s2567 = sshll.u32 %s2564, 4
          %s2568 = int_to_ptr.hbm [resolvable:$true] %s2567
          %2573 = dma.vmem_to_hbm [thread:$0]  %s2566, 2048, %s2568, %s2553, 128, 128, 8
        $region64: #{tpu_custom_call.1} parent=47 // pred_fallthru
          _
      $region48: #{tpu_custom_call.1} parent=5 // pred_fallthru
        _
      %p2574 = scmp.le.s32.totalorder 2, %s31
      // Predicated region
      $region65: #{tpu_custom_call.1} parent=5 // pred_check
        %p2575 = pneg %p2574
      $region66: #{tpu_custom_call.1} parent=5 // pred_check_branch
        %2577 = sbr.rel (%p2575) target = $region68
      $region67: #{tpu_custom_call.1} parent=5 // pred_region
        %s2578 = ssub.s32 %s31, 2
        // Predicated region
        $region69: #{tpu_custom_call.1} parent=67 // pred_check
          %p2579 = pneg %p287
        $region70: #{tpu_custom_call.1} parent=67 // pred_check_branch
          %2581 = sbr.rel (%p2579) target = $region72
        $region71: #{tpu_custom_call.1} parent=67 // pred_region
          %s2582 = sand.u32 %s272, 1
          %s2583 = scalar_lea.sflag [#allocation7], %s2582
          %s2584 = sand.u32 %s272, 1
          %s2585 = smul.addr %s2584, 128
          %s2586 = scalar_lea.vmem [#allocation6], %s2585
          %2588 = dma.done %s2583, 2048
        $region72: #{tpu_custom_call.1} parent=67 // pred_fallthru
          _
      $region68: #{tpu_custom_call.1} parent=5 // pred_fallthru
        _
    $region6: #{tpu_custom_call.1} parent=1 // loop_footer
      %s35 = sadd.s32 1, %s31
    $region7: #{tpu_custom_call.1} parent=1 // loop_footer_branch
      %30 = sbr.rel target = $region3
    $region8: #{tpu_custom_call.1} parent=1 // loop_exit
      _
    %2589 = vsyncpa [#allocation7], 1
    %s2590 = scalar_lea.sflag [#allocation7], 1
    %2591 = vsyncpa %s2590, 1

</llo_original>
